<compile_context>
chip_gen: v7x
topology: tpu7x:2x2x1
jax: 0.10.0
libtpu: 0.0.40
codegen_flags: <defaults>
</compile_context>

<pallas_src>
import functools

import jax
import jax.numpy as jnp
from jax.experimental import pallas as pl
from jax.experimental.pallas import tpu as pltpu


def _softplus(x):
    # Stable softplus using only exp/log (guaranteed Mosaic lowering).
    return jnp.maximum(x, 0.0) + jnp.log(1.0 + jnp.exp(-jnp.abs(x)))


def _dann_kernel(fs_ref, ft_ref, w1_ref, b1_ref, w2_ref, b2_ref, w3_ref, b3_ref,
                 out_ref, *, batch, tile_n, ragged, accumulate):
    i = pl.program_id(0)

    def tile_logits(x_ref):
        # Cast activations to the MXU dtype of the weights (bf16 for f32
        # features); accumulate in f32; bias/ReLU math stays in f32.
        x = x_ref[...].astype(w1_ref.dtype)                      # (tile, D)
        h1 = jnp.dot(x, w1_ref[...],
                     preferred_element_type=jnp.float32) + b1_ref[...]
        h1 = jnp.maximum(h1, 0.0)
        h2 = jnp.dot(h1.astype(w2_ref.dtype), w2_ref[...],
                     preferred_element_type=jnp.float32) + b2_ref[...]
        h2 = jnp.maximum(h2, 0.0)
        # Final H->1 layer on the VPU + lane reduce (avoids a 1-wide MXU out).
        z = jnp.sum(h2 * w3_ref[...], axis=-1, keepdims=True) + b3_ref[0]
        return z                                                  # (tile, 1) f32

    z_s = tile_logits(fs_ref)                                     # source: label 1
    z_t = tile_logits(ft_ref)                                     # target: label 0

    # BCE terms from logits; torch clamps each log at -100 -> clamp at +100.
    term_s = jnp.minimum(_softplus(-z_s), 100.0)                  # = -clamp(log d_s)
    term_t = jnp.minimum(_softplus(z_t), 100.0)                   # = -clamp(log(1-d_t))
    corr_s = (z_s >= 0.0).astype(jnp.float32)                     # pred==1 vs label 1
    corr_t = (z_t < 0.0).astype(jnp.float32)                      # pred==0 vs label 0

    if ragged:
        # Only the (tile, 1) per-row terms are masked (cheap), and with a
        # select so NaN/inf from padded garbage rows never propagates.
        row = jax.lax.broadcasted_iota(jnp.int32, (tile_n, 1), 0) + i * tile_n
        valid = row < batch
        zero = jnp.zeros_like(term_s)
        term_s = jnp.where(valid, term_s, zero)
        term_t = jnp.where(valid, term_t, zero)
        corr_s = jnp.where(valid, corr_s, zero)
        corr_t = jnp.where(valid, corr_t, zero)

    sum_s = jnp.sum(term_s)
    sum_t = jnp.sum(term_t)
    ncorr_s = jnp.sum(corr_s)
    ncorr_t = jnp.sum(corr_t)

    # Lane-dense (8,128) partial-sum block: lanes 0..3 carry the four partials
    # (replicated across sublanes).
    lane = jax.lax.broadcasted_iota(jnp.int32, (8, 128), 1)
    block = jnp.where(lane == 0, sum_s,
            jnp.where(lane == 1, sum_t,
            jnp.where(lane == 2, ncorr_s,
            jnp.where(lane == 3, ncorr_t, 0.0))))

    if accumulate:
        # Single-TC path: resident output block, init on first step.
        @pl.when(i == 0)
        def _():
            out_ref[...] = jnp.zeros_like(out_ref)
        out_ref[...] += block
    else:
        # Multi-TC path: per-tile partials, finalized in JAX.
        out_ref[...] = block.reshape(1, 8, 128)


def domain_adversarial_loss(f_s, f_t, params, *, tile_n=512, parallel=None):
    """Returns (loss, d_accuracy) matching the PyTorch module's forward
    (default path: w_s = w_t = None)."""
    w1, b1, w2, b2, w3, b3 = params
    assert f_s.shape == f_t.shape, "equal source/target batch assumed (torch chunk(2))"
    B, D = f_s.shape
    H = w1.shape[1]

    fdt = f_s.dtype
    # bf16 MXU path for f32 features; otherwise keep the native dtype.
    mxu_dtype = jnp.bfloat16 if fdt == jnp.dtype(jnp.float32) else fdt
    w1c = w1.astype(mxu_dtype)
    w2c = w2.astype(mxu_dtype)
    b1r = b1.reshape(1, H).astype(jnp.float32)
    b2r = b2.reshape(1, H).astype(jnp.float32)
    w3r = w3.reshape(1, H).astype(jnp.float32)            # row layout for VPU reduce
    b3s = b3.reshape((1,)).astype(jnp.float32)            # SMEM scalar

    feat_isz = jnp.dtype(fdt).itemsize
    mxu_isz = jnp.dtype(mxu_dtype).itemsize

    # --- VMEM budget & batch-tile selection -------------------------------
    try:
        vmem_cap = int(pltpu.get_tpu_info().vmem_capacity_bytes)
    except Exception:
        vmem_cap = 64 << 20                                # conservative (v7x)
    vmem_budget = (vmem_cap * 3) // 4                      # leave headroom

    # Worst-case estimate (assume weights double-buffered in case the
    # Buffered(1) fallback is taken).
    w_bytes = 2 * ((D * H + H * H) * mxu_isz + (3 * H) * 4)

    def est_bytes(t):
        feats = 2 * 2 * t * D * feat_isz                   # 2 inputs x 2 buffers
        temps = 4 * t * H * 4 + 8 * t * 4                  # h1/h2 f32 (2 domains) + logits
        return w_bytes + feats + temps + 2 * 8 * 128 * 4

    tile = B if B <= tile_n else max(8, (tile_n // 8) * 8)
    while tile > 8 and est_bytes(tile) > vmem_budget:
        tile = max(8, ((tile // 2) + 7) // 8 * 8)

    num_tiles = pl.cdiv(B, tile)
    ragged = (num_tiles * tile) != B

    vmem_limit = min(max(int(est_bytes(tile) * 1.5) + (4 << 20), 16 << 20),
                     vmem_budget)

    # --- Grid semantics: parallel split only pays off on multi-TC chips ----
    if parallel is None:
        try:
            kind = jax.devices()[0].device_kind.lower()
        except Exception:
            kind = ""
        multi_tc = any(tag in kind for tag in ("v7", "tpu7", "7x"))
        parallel = bool(multi_tc and num_tiles >= 4)

    kernel = functools.partial(_dann_kernel, batch=B, tile_n=tile,
                               ragged=ragged, accumulate=not parallel)

    feat_spec = pl.BlockSpec((tile, D), lambda i: (i, 0))

    if parallel:
        out_shape = jax.ShapeDtypeStruct((num_tiles, 8, 128), jnp.float32)
        out_spec = pl.BlockSpec((1, 8, 128), lambda i: (i, 0, 0))
        dim_sems = ("parallel",)
    else:
        out_shape = jax.ShapeDtypeStruct((8, 128), jnp.float32)
        out_spec = pl.BlockSpec((8, 128), lambda i: (0, 0))
        dim_sems = ("arbitrary",)

    cost = pl.CostEstimate(
        flops=4 * B * (D * H + H * H + H),                 # 2 domains x 2 flops/MAC
        transcendentals=4 * B,                             # exp + log per row per domain
        bytes_accessed=(2 * B * D * feat_isz
                        + (D * H + H * H) * mxu_isz
                        + (3 * H + 1) * 4
                        + (num_tiles if parallel else 1) * 8 * 128 * 4),
    )

    def _run(single_buffer_weights):
        def const_spec(shape):
            if single_buffer_weights:
                # Constant index_map => resident; a second pipeline buffer is waste.
                return pl.BlockSpec(shape, lambda i: (0, 0),
                                    pipeline_mode=pl.Buffered(buffer_count=1))
            return pl.BlockSpec(shape, lambda i: (0, 0))

        in_specs = [
            feat_spec,                                     # f_s tile
            feat_spec,                                     # f_t tile
            const_spec((D, H)),                            # w1
            const_spec((1, H)),                            # b1
            const_spec((H, H)),                            # w2
            const_spec((1, H)),                            # b2
            const_spec((1, H)),                            # w3 (row)
            pl.BlockSpec(memory_space=pltpu.MemorySpace.SMEM),   # b3 scalar
        ]
        return pl.pallas_call(
            kernel,
            out_shape=out_shape,
            grid=(num_tiles,),
            in_specs=in_specs,
            out_specs=out_spec,
            compiler_params=pltpu.CompilerParams(
                dimension_semantics=dim_sems,
                vmem_limit_bytes=vmem_limit),
            cost_estimate=cost,
        )(f_s, f_t, w1c, b1r, w2c, b2r, w3r, b3s)

    try:
        partials = _run(True)
    except Exception:
        # TODO(synk): pipeline_mode=pl.Buffered(1) unsupported on this JAX
        # version; fall back to default (double-buffered) resident weights.
        partials = _run(False)

    if parallel:
        sums = jnp.sum(partials[:, 0, :4], axis=0)         # (4,) lanes 0..3
    else:
        sums = partials[0, :4]

    loss = 0.5 * (sums[0] + sums[1]) / B
    acc = 50.0 * (sums[2] + sums[3]) / B
    return loss, acc


def init_params(key, in_dim, hidden):
    """Deterministic init of the domain discriminator MLP parameters."""
    k1, k2, k3 = jax.random.split(key, 3)
    w1 = jax.random.normal(k1, (in_dim, hidden), jnp.float32) * (1.0 / jnp.sqrt(in_dim))
    b1 = jnp.zeros((1, hidden), jnp.float32)
    w2 = jax.random.normal(k2, (hidden, hidden), jnp.float32) * (1.0 / jnp.sqrt(hidden))
    b2 = jnp.zeros((1, hidden), jnp.float32)
    w3 = jax.random.normal(k3, (hidden, 1), jnp.float32) * (1.0 / jnp.sqrt(hidden))
    b3 = jnp.zeros((1, 1), jnp.float32)
    return (w1, b1, w2, b2, w3, b3)


def _ref_torch_f32(f_s, f_t, params):
    """Pure-JAX reference with exact torch semantics (sigmoid + clamped log BCE), f32."""
    w1, b1, w2, b2, w3, b3 = params
    B = f_s.shape[0]
    f = jnp.concatenate([f_s, f_t], axis=0)
    h1 = jnp.maximum(f @ w1 + b1.reshape(1, -1), 0.0)
    h2 = jnp.maximum(h1 @ w2 + b2.reshape(1, -1), 0.0)
    d = jax.nn.sigmoid(h2 @ w3 + b3.reshape(1, -1))
    d_s, d_t = d[:B], d[B:]
    loss = 0.5 * (-jnp.mean(jnp.maximum(jnp.log(d_s), -100.0))
                  - jnp.mean(jnp.maximum(jnp.log(1.0 - d_t), -100.0)))
    acc = 0.5 * (100.0 * jnp.mean((d_s >= 0.5).astype(jnp.float32))
                 + 100.0 * jnp.mean((d_t < 0.5).astype(jnp.float32)))
    return loss, acc


def _ref_matched(f_s, f_t, params):
    """Reference matching the kernel's compute precision (bf16 MXU, f32 accum)."""
    w1, b1, w2, b2, w3, b3 = params
    mxu = jnp.bfloat16

    def logits(x):
        h1 = jnp.dot(x.astype(mxu), w1.astype(mxu),
                     preferred_element_type=jnp.float32) + b1.reshape(1, -1)
        h1 = jnp.maximum(h1, 0.0)
        h2 = jnp.dot(h1.astype(mxu), w2.astype(mxu),
                     preferred_element_type=jnp.float32) + b2.reshape(1, -1)
        h2 = jnp.maximum(h2, 0.0)
        return jnp.sum(h2 * w3.reshape(1, -1), axis=-1, keepdims=True) + b3.reshape(())

    z_s, z_t = logits(f_s), logits(f_t)
    sp = lambda x: jnp.maximum(x, 0.0) + jnp.log(1.0 + jnp.exp(-jnp.abs(x)))
    loss = 0.5 * (jnp.mean(jnp.minimum(sp(-z_s), 100.0))
                  + jnp.mean(jnp.minimum(sp(z_t), 100.0)))
    acc = 0.5 * (100.0 * jnp.mean((z_s >= 0.0).astype(jnp.float32))
                 + 100.0 * jnp.mean((z_t < 0.0).astype(jnp.float32)))
    return loss, acc


if __name__ == "__main__":
    D, H = 32, 32
    key = jax.random.PRNGKey(0)
    kf, kp = jax.random.split(key)
    params = init_params(kp, D, H)

    def check(B, tile_n, parallel):
        f_s = jax.random.normal(jax.random.fold_in(kf, 2 * B), (B, D), jnp.float32)
        f_t = jax.random.normal(jax.random.fold_in(kf, 2 * B + 1), (B, D), jnp.float32)
        loss, acc = domain_adversarial_loss(f_s, f_t, params,
                                            tile_n=tile_n, parallel=parallel)
        jax.block_until_ready((loss, acc))

        # Tight check against a precision-matched (bf16 MXU) reference.
        m_loss, m_acc = _ref_matched(f_s, f_t, params)
        assert jnp.allclose(loss, m_loss, rtol=5e-3, atol=5e-3), (loss, m_loss)
        assert jnp.allclose(acc, m_acc, rtol=1e-3, atol=1e-3), (acc, m_acc)

        # Looser check against the exact f32 torch-semantics reference
        # (bf16 MXU path drifts slightly; allow at most one accuracy flip).
        r_loss, r_acc = _ref_torch_f32(f_s, f_t, params)
        assert jnp.allclose(loss, r_loss, rtol=5e-2, atol=5e-2), (loss, r_loss)
        assert jnp.allclose(acc, r_acc, atol=100.0 / (2 * B) + 1e-3), (acc, r_acc)

    # 1) Even batch, multi-tile grid, auto path selection.
    check(B=16, tile_n=8, parallel=None)
    # 2) Ragged batch (B=20, tile=8), single-TC accumulate path ("arbitrary").
    check(B=20, tile_n=8, parallel=False)
    # 3) Ragged batch, per-tile partials + "parallel" path.
    check(B=20, tile_n=8, parallel=True)

    print("KERNEL_OK")
</pallas_src>

<mosaic_0001>
module attributes {stable_mosaic.version = 11 : i64} {
  func.func @_dann_kernel(%arg0: i32, %arg1: memref<8x32xf32, #tpu.memory_space<vmem>>, %arg2: memref<8x32xf32, #tpu.memory_space<vmem>>, %arg3: memref<32x32xbf16, #tpu.memory_space<vmem>>, %arg4: memref<1x32xf32, #tpu.memory_space<vmem>>, %arg5: memref<32x32xbf16, #tpu.memory_space<vmem>>, %arg6: memref<1x32xf32, #tpu.memory_space<vmem>>, %arg7: memref<1x32xf32, #tpu.memory_space<vmem>>, %arg8: memref<1xf32, #tpu.memory_space<smem>>, %arg9: memref<8x128xf32, #tpu.memory_space<vmem>>) attributes {dimension_semantics = [#tpu.dimension_semantics<arbitrary>], iteration_bounds = array<i64: 2>, scalar_prefetch = 0 : i64, scratch_operands = 0 : i64, tpu.core_type = #tpu.core_type<tc>, window_params = [{transform_indices = @transform_0, window_bounds = array<i64: 8, 32>}, {transform_indices = @transform_1, window_bounds = array<i64: 8, 32>}, {pipeline_mode = #tpu.pipeline_mode<synchronous>, transform_indices = @transform_2, window_bounds = array<i64: 32, 32>}, {pipeline_mode = #tpu.pipeline_mode<synchronous>, transform_indices = @transform_3, window_bounds = array<i64: 1, 32>}, {pipeline_mode = #tpu.pipeline_mode<synchronous>, transform_indices = @transform_4, window_bounds = array<i64: 32, 32>}, {pipeline_mode = #tpu.pipeline_mode<synchronous>, transform_indices = @transform_5, window_bounds = array<i64: 1, 32>}, {pipeline_mode = #tpu.pipeline_mode<synchronous>, transform_indices = @transform_6, window_bounds = array<i64: 1, 32>}, {transform_indices = @transform_7, window_bounds = array<i64: 1>}, {pipeline_mode = #tpu.pipeline_mode<synchronous>, transform_indices = @transform_8, window_bounds = array<i64: 8, 128>}]} {
    %c0 = arith.constant 0 : index
    %c0_0 = arith.constant 0 : index
    %0 = vector.load %arg1[%c0, %c0_0] : memref<8x32xf32, #tpu.memory_space<vmem>>, vector<8x32xf32>
    %1 = arith.truncf %0 : vector<8x32xf32> to vector<8x32xbf16>
    %c0_1 = arith.constant 0 : index
    %c0_2 = arith.constant 0 : index
    %2 = vector.load %arg3[%c0_1, %c0_2] : memref<32x32xbf16, #tpu.memory_space<vmem>>, vector<32x32xbf16>
    %cst = arith.constant dense<0.000000e+00> : vector<8x32xf32>
    %3 = tpu.matmul %1, %2, %cst {dimension_numbers = #tpu.dot_dimension_numbers<[1], [0], [0], [1], [0, 0, 1, 1], [], []>} : vector<8x32xbf16>, vector<32x32xbf16>, vector<8x32xf32> -> vector<8x32xf32>
    %c0_3 = arith.constant 0 : index
    %c0_4 = arith.constant 0 : index
    %4 = vector.load %arg4[%c0_3, %c0_4] : memref<1x32xf32, #tpu.memory_space<vmem>>, vector<1x32xf32>
    %5 = vector.broadcast %4 : vector<1x32xf32> to vector<8x32xf32>
    %6 = arith.addf %3, %5 : vector<8x32xf32>
    %cst_5 = arith.constant 0.000000e+00 : f32
    %7 = vector.broadcast %cst_5 : f32 to vector<8x32xf32>
    %8 = arith.maximumf %6, %7 : vector<8x32xf32>
    %9 = arith.truncf %8 : vector<8x32xf32> to vector<8x32xbf16>
    %c0_6 = arith.constant 0 : index
    %c0_7 = arith.constant 0 : index
    %10 = vector.load %arg5[%c0_6, %c0_7] : memref<32x32xbf16, #tpu.memory_space<vmem>>, vector<32x32xbf16>
    %cst_8 = arith.constant dense<0.000000e+00> : vector<8x32xf32>
    %11 = tpu.matmul %9, %10, %cst_8 {dimension_numbers = #tpu.dot_dimension_numbers<[1], [0], [0], [1], [0, 0, 1, 1], [], []>} : vector<8x32xbf16>, vector<32x32xbf16>, vector<8x32xf32> -> vector<8x32xf32>
    %c0_9 = arith.constant 0 : index
    %c0_10 = arith.constant 0 : index
    %12 = vector.load %arg6[%c0_9, %c0_10] : memref<1x32xf32, #tpu.memory_space<vmem>>, vector<1x32xf32>
    %13 = vector.broadcast %12 : vector<1x32xf32> to vector<8x32xf32>
    %14 = arith.addf %11, %13 : vector<8x32xf32>
    %cst_11 = arith.constant 0.000000e+00 : f32
    %15 = vector.broadcast %cst_11 : f32 to vector<8x32xf32>
    %16 = arith.maximumf %14, %15 : vector<8x32xf32>
    %c0_12 = arith.constant 0 : index
    %c0_13 = arith.constant 0 : index
    %17 = vector.load %arg7[%c0_12, %c0_13] : memref<1x32xf32, #tpu.memory_space<vmem>>, vector<1x32xf32>
    %18 = vector.broadcast %17 : vector<1x32xf32> to vector<8x32xf32>
    %19 = arith.mulf %16, %18 : vector<8x32xf32>
    %cst_14 = arith.constant dense<0.000000e+00> : vector<8xf32>
    %20 = vector.multi_reduction <add>, %19, %cst_14 [1] : vector<8x32xf32> to vector<8xf32>
    %21 = vector.shape_cast %20 : vector<8xf32> to vector<8x1xf32>
    %c0_15 = arith.constant 0 : index
    %22 = memref.load %arg8[%c0_15] : memref<1xf32, #tpu.memory_space<smem>>
    %23 = vector.broadcast %22 : f32 to vector<8x1xf32>
    %24 = arith.addf %21, %23 : vector<8x1xf32>
    %c0_16 = arith.constant 0 : index
    %c0_17 = arith.constant 0 : index
    %25 = vector.load %arg2[%c0_16, %c0_17] : memref<8x32xf32, #tpu.memory_space<vmem>>, vector<8x32xf32>
    %26 = arith.truncf %25 : vector<8x32xf32> to vector<8x32xbf16>
    %c0_18 = arith.constant 0 : index
    %c0_19 = arith.constant 0 : index
    %27 = vector.load %arg3[%c0_18, %c0_19] : memref<32x32xbf16, #tpu.memory_space<vmem>>, vector<32x32xbf16>
    %cst_20 = arith.constant dense<0.000000e+00> : vector<8x32xf32>
    %28 = tpu.matmul %26, %27, %cst_20 {dimension_numbers = #tpu.dot_dimension_numbers<[1], [0], [0], [1], [0, 0, 1, 1], [], []>} : vector<8x32xbf16>, vector<32x32xbf16>, vector<8x32xf32> -> vector<8x32xf32>
    %c0_21 = arith.constant 0 : index
    %c0_22 = arith.constant 0 : index
    %29 = vector.load %arg4[%c0_21, %c0_22] : memref<1x32xf32, #tpu.memory_space<vmem>>, vector<1x32xf32>
    %30 = vector.broadcast %29 : vector<1x32xf32> to vector<8x32xf32>
    %31 = arith.addf %28, %30 : vector<8x32xf32>
    %cst_23 = arith.constant 0.000000e+00 : f32
    %32 = vector.broadcast %cst_23 : f32 to vector<8x32xf32>
    %33 = arith.maximumf %31, %32 : vector<8x32xf32>
    %34 = arith.truncf %33 : vector<8x32xf32> to vector<8x32xbf16>
    %c0_24 = arith.constant 0 : index
    %c0_25 = arith.constant 0 : index
    %35 = vector.load %arg5[%c0_24, %c0_25] : memref<32x32xbf16, #tpu.memory_space<vmem>>, vector<32x32xbf16>
    %cst_26 = arith.constant dense<0.000000e+00> : vector<8x32xf32>
    %36 = tpu.matmul %34, %35, %cst_26 {dimension_numbers = #tpu.dot_dimension_numbers<[1], [0], [0], [1], [0, 0, 1, 1], [], []>} : vector<8x32xbf16>, vector<32x32xbf16>, vector<8x32xf32> -> vector<8x32xf32>
    %c0_27 = arith.constant 0 : index
    %c0_28 = arith.constant 0 : index
    %37 = vector.load %arg6[%c0_27, %c0_28] : memref<1x32xf32, #tpu.memory_space<vmem>>, vector<1x32xf32>
    %38 = vector.broadcast %37 : vector<1x32xf32> to vector<8x32xf32>
    %39 = arith.addf %36, %38 : vector<8x32xf32>
    %cst_29 = arith.constant 0.000000e+00 : f32
    %40 = vector.broadcast %cst_29 : f32 to vector<8x32xf32>
    %41 = arith.maximumf %39, %40 : vector<8x32xf32>
    %c0_30 = arith.constant 0 : index
    %c0_31 = arith.constant 0 : index
    %42 = vector.load %arg7[%c0_30, %c0_31] : memref<1x32xf32, #tpu.memory_space<vmem>>, vector<1x32xf32>
    %43 = vector.broadcast %42 : vector<1x32xf32> to vector<8x32xf32>
    %44 = arith.mulf %41, %43 : vector<8x32xf32>
    %cst_32 = arith.constant dense<0.000000e+00> : vector<8xf32>
    %45 = vector.multi_reduction <add>, %44, %cst_32 [1] : vector<8x32xf32> to vector<8xf32>
    %46 = vector.shape_cast %45 : vector<8xf32> to vector<8x1xf32>
    %c0_33 = arith.constant 0 : index
    %47 = memref.load %arg8[%c0_33] : memref<1xf32, #tpu.memory_space<smem>>
    %48 = vector.broadcast %47 : f32 to vector<8x1xf32>
    %49 = arith.addf %46, %48 : vector<8x1xf32>
    %cst_34 = arith.constant 0.000000e+00 : f32
    %50 = vector.broadcast %cst_34 : f32 to vector<8x1xf32>
    %51 = arith.subf %50, %24 : vector<8x1xf32>
    %cst_35 = arith.constant 0.000000e+00 : f32
    %52 = vector.broadcast %cst_35 : f32 to vector<8x1xf32>
    %53 = arith.maximumf %51, %52 : vector<8x1xf32>
    %54 = math.absf %51 : vector<8x1xf32>
    %cst_36 = arith.constant 0.000000e+00 : f32
    %55 = vector.broadcast %cst_36 : f32 to vector<8x1xf32>
    %56 = arith.subf %55, %54 : vector<8x1xf32>
    %57 = math.exp %56 : vector<8x1xf32>
    %cst_37 = arith.constant 1.000000e+00 : f32
    %58 = vector.broadcast %cst_37 : f32 to vector<8x1xf32>
    %59 = arith.addf %58, %57 : vector<8x1xf32>
    %60 = math.log %59 : vector<8x1xf32>
    %61 = arith.addf %53, %60 : vector<8x1xf32>
    %cst_38 = arith.constant 1.000000e+02 : f32
    %62 = vector.broadcast %cst_38 : f32 to vector<8x1xf32>
    %63 = arith.minimumf %61, %62 : vector<8x1xf32>
    %cst_39 = arith.constant 0.000000e+00 : f32
    %64 = vector.broadcast %cst_39 : f32 to vector<8x1xf32>
    %65 = arith.maximumf %49, %64 : vector<8x1xf32>
    %66 = math.absf %49 : vector<8x1xf32>
    %cst_40 = arith.constant 0.000000e+00 : f32
    %67 = vector.broadcast %cst_40 : f32 to vector<8x1xf32>
    %68 = arith.subf %67, %66 : vector<8x1xf32>
    %69 = math.exp %68 : vector<8x1xf32>
    %cst_41 = arith.constant 1.000000e+00 : f32
    %70 = vector.broadcast %cst_41 : f32 to vector<8x1xf32>
    %71 = arith.addf %70, %69 : vector<8x1xf32>
    %72 = math.log %71 : vector<8x1xf32>
    %73 = arith.addf %65, %72 : vector<8x1xf32>
    %cst_42 = arith.constant 1.000000e+02 : f32
    %74 = vector.broadcast %cst_42 : f32 to vector<8x1xf32>
    %75 = arith.minimumf %73, %74 : vector<8x1xf32>
    %cst_43 = arith.constant 0.000000e+00 : f32
    %76 = vector.broadcast %cst_43 : f32 to vector<8x1xf32>
    %77 = arith.cmpf oge, %24, %76 : vector<8x1xf32>
    %78 = arith.extui %77 : vector<8x1xi1> to vector<8x1xi32>
    %79 = arith.sitofp %78 : vector<8x1xi32> to vector<8x1xf32>
    %cst_44 = arith.constant 0.000000e+00 : f32
    %80 = vector.broadcast %cst_44 : f32 to vector<8x1xf32>
    %81 = arith.cmpf olt, %49, %80 : vector<8x1xf32>
    %82 = arith.extui %81 : vector<8x1xi1> to vector<8x1xi32>
    %83 = arith.sitofp %82 : vector<8x1xi32> to vector<8x1xf32>
    %84 = vector.shape_cast %63 : vector<8x1xf32> to vector<1x8x1xf32>
    %cst_45 = arith.constant dense<0.000000e+00> : vector<1xf32>
    %85 = vector.multi_reduction <add>, %84, %cst_45 [1, 2] : vector<1x8x1xf32> to vector<1xf32>
    %86 = vector.shape_cast %85 : vector<1xf32> to vector<1x1x1xf32>
    %87 = vector.extract %86[0, 0, 0] : f32 from vector<1x1x1xf32>
    %88 = vector.shape_cast %75 : vector<8x1xf32> to vector<1x8x1xf32>
    %cst_46 = arith.constant dense<0.000000e+00> : vector<1xf32>
    %89 = vector.multi_reduction <add>, %88, %cst_46 [1, 2] : vector<1x8x1xf32> to vector<1xf32>
    %90 = vector.shape_cast %89 : vector<1xf32> to vector<1x1x1xf32>
    %91 = vector.extract %90[0, 0, 0] : f32 from vector<1x1x1xf32>
    %92 = vector.shape_cast %79 : vector<8x1xf32> to vector<1x8x1xf32>
    %cst_47 = arith.constant dense<0.000000e+00> : vector<1xf32>
    %93 = vector.multi_reduction <add>, %92, %cst_47 [1, 2] : vector<1x8x1xf32> to vector<1xf32>
    %94 = vector.shape_cast %93 : vector<1xf32> to vector<1x1x1xf32>
    %95 = vector.extract %94[0, 0, 0] : f32 from vector<1x1x1xf32>
    %96 = vector.shape_cast %83 : vector<8x1xf32> to vector<1x8x1xf32>
    %cst_48 = arith.constant dense<0.000000e+00> : vector<1xf32>
    %97 = vector.multi_reduction <add>, %96, %cst_48 [1, 2] : vector<1x8x1xf32> to vector<1xf32>
    %98 = vector.shape_cast %97 : vector<1xf32> to vector<1x1x1xf32>
    %99 = vector.extract %98[0, 0, 0] : f32 from vector<1x1x1xf32>
    %100 = tpu.iota {dimensions = array<i32: 1>} : vector<8x128xi32>
    %c0_i32 = arith.constant 0 : i32
    %101 = vector.broadcast %c0_i32 : i32 to vector<8x128xi32>
    %102 = arith.cmpi eq, %100, %101 : vector<8x128xi32>
    %c1_i32 = arith.constant 1 : i32
    %103 = vector.broadcast %c1_i32 : i32 to vector<8x128xi32>
    %104 = arith.cmpi eq, %100, %103 : vector<8x128xi32>
    %c2_i32 = arith.constant 2 : i32
    %105 = vector.broadcast %c2_i32 : i32 to vector<8x128xi32>
    %106 = arith.cmpi eq, %100, %105 : vector<8x128xi32>
    %c3_i32 = arith.constant 3 : i32
    %107 = vector.broadcast %c3_i32 : i32 to vector<8x128xi32>
    %108 = arith.cmpi eq, %100, %107 : vector<8x128xi32>
    %cst_49 = arith.constant 0.000000e+00 : f32
    %109 = vector.broadcast %99 : f32 to vector<8x128xf32>
    %110 = vector.broadcast %cst_49 : f32 to vector<8x128xf32>
    %111 = arith.select %108, %109, %110 : vector<8x128xi1>, vector<8x128xf32>
    %112 = vector.broadcast %95 : f32 to vector<8x128xf32>
    %113 = arith.select %106, %112, %111 : vector<8x128xi1>, vector<8x128xf32>
    %114 = vector.broadcast %91 : f32 to vector<8x128xf32>
    %115 = arith.select %104, %114, %113 : vector<8x128xi1>, vector<8x128xf32>
    %116 = vector.broadcast %87 : f32 to vector<8x128xf32>
    %117 = arith.select %102, %116, %115 : vector<8x128xi1>, vector<8x128xf32>
    %c0_i32_50 = arith.constant 0 : i32
    %118 = arith.cmpi eq, %arg0, %c0_i32_50 : i32
    %119 = arith.extui %118 : i1 to i32
    %c0_i32_51 = arith.constant 0 : i32
    %120 = arith.cmpi ne, %119, %c0_i32_51 : i32
    scf.if %120 {
      %cst_56 = arith.constant 0.000000e+00 : f32
      %124 = vector.broadcast %cst_56 : f32 to vector<8x128xf32>
      %c0_57 = arith.constant 0 : index
      %c0_58 = arith.constant 0 : index
      %125 = vector.load %arg9[%c0_57, %c0_58] : memref<8x128xf32, #tpu.memory_space<vmem>>, vector<8x128xf32>
      tpu.vector_store %arg9[%c0_57, %c0_58], %124 {strides = array<i32>} : memref<8x128xf32, #tpu.memory_space<vmem>>, vector<8x128xf32>,
    } else {
    }
    %c0_52 = arith.constant 0 : index
    %c0_53 = arith.constant 0 : index
    %121 = vector.load %arg9[%c0_52, %c0_53] : memref<8x128xf32, #tpu.memory_space<vmem>>, vector<8x128xf32>
    %122 = arith.addf %121, %117 : vector<8x128xf32>
    %c0_54 = arith.constant 0 : index
    %c0_55 = arith.constant 0 : index
    %123 = vector.load %arg9[%c0_54, %c0_55] : memref<8x128xf32, #tpu.memory_space<vmem>>, vector<8x128xf32>
    tpu.vector_store %arg9[%c0_54, %c0_55], %122 {strides = array<i32>} : memref<8x128xf32, #tpu.memory_space<vmem>>, vector<8x128xf32>,
    return
  }
  func.func @transform_0(%arg0: i32) -> (i32, i32) {
    %c0_i32 = arith.constant 0 : i32
    %c0_i32_0 = arith.constant 0 : i32
    return %arg0, %c0_i32 : i32, i32
  }
  func.func @transform_1(%arg0: i32) -> (i32, i32) {
    %c0_i32 = arith.constant 0 : i32
    %c0_i32_0 = arith.constant 0 : i32
    return %arg0, %c0_i32 : i32, i32
  }
  func.func @transform_2(%arg0: i32) -> (i32, i32) {
    %c0_i32 = arith.constant 0 : i32
    %c0_i32_0 = arith.constant 0 : i32
    %c0_i32_1 = arith.constant 0 : i32
    return %c0_i32, %c0_i32_0 : i32, i32
  }
  func.func @transform_3(%arg0: i32) -> (i32, i32) {
    %c0_i32 = arith.constant 0 : i32
    %c0_i32_0 = arith.constant 0 : i32
    %c0_i32_1 = arith.constant 0 : i32
    return %c0_i32, %c0_i32_0 : i32, i32
  }
  func.func @transform_4(%arg0: i32) -> (i32, i32) {
    %c0_i32 = arith.constant 0 : i32
    %c0_i32_0 = arith.constant 0 : i32
    %c0_i32_1 = arith.constant 0 : i32
    return %c0_i32, %c0_i32_0 : i32, i32
  }
  func.func @transform_5(%arg0: i32) -> (i32, i32) {
    %c0_i32 = arith.constant 0 : i32
    %c0_i32_0 = arith.constant 0 : i32
    %c0_i32_1 = arith.constant 0 : i32
    return %c0_i32, %c0_i32_0 : i32, i32
  }
  func.func @transform_6(%arg0: i32) -> (i32, i32) {
    %c0_i32 = arith.constant 0 : i32
    %c0_i32_0 = arith.constant 0 : i32
    %c0_i32_1 = arith.constant 0 : i32
    return %c0_i32, %c0_i32_0 : i32, i32
  }
  func.func @transform_7(%arg0: i32) -> i32 {
    %c0_i32 = arith.constant 0 : i32
    %c0_i32_0 = arith.constant 0 : i32
    return %c0_i32 : i32
  }
  func.func @transform_8(%arg0: i32) -> (i32, i32) {
    %c0_i32 = arith.constant 0 : i32
    %c0_i32_0 = arith.constant 0 : i32
    %c0_i32_1 = arith.constant 0 : i32
    return %c0_i32, %c0_i32_0 : i32, i32
  }
}

module attributes {stable_mosaic.version = 11 : i64} {
  func.func @_dann_kernel(%arg0: i32, %arg1: memref<8x32xf32, #tpu.memory_space<vmem>>, %arg2: memref<8x32xf32, #tpu.memory_space<vmem>>, %arg3: memref<32x32xbf16, #tpu.memory_space<vmem>>, %arg4: memref<1x32xf32, #tpu.memory_space<vmem>>, %arg5: memref<32x32xbf16, #tpu.memory_space<vmem>>, %arg6: memref<1x32xf32, #tpu.memory_space<vmem>>, %arg7: memref<1x32xf32, #tpu.memory_space<vmem>>, %arg8: memref<1xf32, #tpu.memory_space<smem>>, %arg9: memref<8x128xf32, #tpu.memory_space<vmem>>) attributes {dimension_semantics = [#tpu.dimension_semantics<arbitrary>], iteration_bounds = array<i64: 2>, scalar_prefetch = 0 : i64, scratch_operands = 0 : i64, tpu.core_type = #tpu.core_type<tc>, window_params = [{transform_indices = @transform_0, window_bounds = array<i64: 8, 32>}, {transform_indices = @transform_1, window_bounds = array<i64: 8, 32>}, {pipeline_mode = #tpu.pipeline_mode<synchronous>, transform_indices = @transform_2, window_bounds = array<i64: 32, 32>}, {pipeline_mode = #tpu.pipeline_mode<synchronous>, transform_indices = @transform_3, window_bounds = array<i64: 1, 32>}, {pipeline_mode = #tpu.pipeline_mode<synchronous>, transform_indices = @transform_4, window_bounds = array<i64: 32, 32>}, {pipeline_mode = #tpu.pipeline_mode<synchronous>, transform_indices = @transform_5, window_bounds = array<i64: 1, 32>}, {pipeline_mode = #tpu.pipeline_mode<synchronous>, transform_indices = @transform_6, window_bounds = array<i64: 1, 32>}, {transform_indices = @transform_7, window_bounds = array<i64: 1>}, {pipeline_mode = #tpu.pipeline_mode<synchronous>, transform_indices = @transform_8, window_bounds = array<i64: 8, 128>}]} {
    %c0 = arith.constant 0 : index
    %c0_0 = arith.constant 0 : index
    %0 = vector.load %arg1[%c0, %c0_0] : memref<8x32xf32, #tpu.memory_space<vmem>>, vector<8x32xf32>
    %1 = arith.truncf %0 : vector<8x32xf32> to vector<8x32xbf16>
    %c0_1 = arith.constant 0 : index
    %c0_2 = arith.constant 0 : index
    %2 = vector.load %arg3[%c0_1, %c0_2] : memref<32x32xbf16, #tpu.memory_space<vmem>>, vector<32x32xbf16>
    %cst = arith.constant dense<0.000000e+00> : vector<8x32xf32>
    %3 = tpu.matmul %1, %2, %cst {dimension_numbers = #tpu.dot_dimension_numbers<[1], [0], [0], [1], [0, 0, 1, 1], [], []>} : vector<8x32xbf16>, vector<32x32xbf16>, vector<8x32xf32> -> vector<8x32xf32>
    %c0_3 = arith.constant 0 : index
    %c0_4 = arith.constant 0 : index
    %4 = vector.load %arg4[%c0_3, %c0_4] : memref<1x32xf32, #tpu.memory_space<vmem>>, vector<1x32xf32>
    %5 = vector.broadcast %4 : vector<1x32xf32> to vector<8x32xf32>
    %6 = arith.addf %3, %5 : vector<8x32xf32>
    %cst_5 = arith.constant 0.000000e+00 : f32
    %7 = vector.broadcast %cst_5 : f32 to vector<8x32xf32>
    %8 = arith.maximumf %6, %7 : vector<8x32xf32>
    %9 = arith.truncf %8 : vector<8x32xf32> to vector<8x32xbf16>
    %c0_6 = arith.constant 0 : index
    %c0_7 = arith.constant 0 : index
    %10 = vector.load %arg5[%c0_6, %c0_7] : memref<32x32xbf16, #tpu.memory_space<vmem>>, vector<32x32xbf16>
    %cst_8 = arith.constant dense<0.000000e+00> : vector<8x32xf32>
    %11 = tpu.matmul %9, %10, %cst_8 {dimension_numbers = #tpu.dot_dimension_numbers<[1], [0], [0], [1], [0, 0, 1, 1], [], []>} : vector<8x32xbf16>, vector<32x32xbf16>, vector<8x32xf32> -> vector<8x32xf32>
    %c0_9 = arith.constant 0 : index
    %c0_10 = arith.constant 0 : index
    %12 = vector.load %arg6[%c0_9, %c0_10] : memref<1x32xf32, #tpu.memory_space<vmem>>, vector<1x32xf32>
    %13 = vector.broadcast %12 : vector<1x32xf32> to vector<8x32xf32>
    %14 = arith.addf %11, %13 : vector<8x32xf32>
    %cst_11 = arith.constant 0.000000e+00 : f32
    %15 = vector.broadcast %cst_11 : f32 to vector<8x32xf32>
    %16 = arith.maximumf %14, %15 : vector<8x32xf32>
    %c0_12 = arith.constant 0 : index
    %c0_13 = arith.constant 0 : index
    %17 = vector.load %arg7[%c0_12, %c0_13] : memref<1x32xf32, #tpu.memory_space<vmem>>, vector<1x32xf32>
    %18 = vector.broadcast %17 : vector<1x32xf32> to vector<8x32xf32>
    %19 = arith.mulf %16, %18 : vector<8x32xf32>
    %cst_14 = arith.constant dense<0.000000e+00> : vector<8xf32>
    %20 = vector.multi_reduction <add>, %19, %cst_14 [1] : vector<8x32xf32> to vector<8xf32>
    %21 = vector.shape_cast %20 : vector<8xf32> to vector<8x1xf32>
    %c0_15 = arith.constant 0 : index
    %22 = memref.load %arg8[%c0_15] : memref<1xf32, #tpu.memory_space<smem>>
    %23 = vector.broadcast %22 : f32 to vector<8x1xf32>
    %24 = arith.addf %21, %23 : vector<8x1xf32>
    %c0_16 = arith.constant 0 : index
    %c0_17 = arith.constant 0 : index
    %25 = vector.load %arg2[%c0_16, %c0_17] : memref<8x32xf32, #tpu.memory_space<vmem>>, vector<8x32xf32>
    %26 = arith.truncf %25 : vector<8x32xf32> to vector<8x32xbf16>
    %c0_18 = arith.constant 0 : index
    %c0_19 = arith.constant 0 : index
    %27 = vector.load %arg3[%c0_18, %c0_19] : memref<32x32xbf16, #tpu.memory_space<vmem>>, vector<32x32xbf16>
    %cst_20 = arith.constant dense<0.000000e+00> : vector<8x32xf32>
    %28 = tpu.matmul %26, %27, %cst_20 {dimension_numbers = #tpu.dot_dimension_numbers<[1], [0], [0], [1], [0, 0, 1, 1], [], []>} : vector<8x32xbf16>, vector<32x32xbf16>, vector<8x32xf32> -> vector<8x32xf32>
    %c0_21 = arith.constant 0 : index
    %c0_22 = arith.constant 0 : index
    %29 = vector.load %arg4[%c0_21, %c0_22] : memref<1x32xf32, #tpu.memory_space<vmem>>, vector<1x32xf32>
    %30 = vector.broadcast %29 : vector<1x32xf32> to vector<8x32xf32>
    %31 = arith.addf %28, %30 : vector<8x32xf32>
    %cst_23 = arith.constant 0.000000e+00 : f32
    %32 = vector.broadcast %cst_23 : f32 to vector<8x32xf32>
    %33 = arith.maximumf %31, %32 : vector<8x32xf32>
    %34 = arith.truncf %33 : vector<8x32xf32> to vector<8x32xbf16>
    %c0_24 = arith.constant 0 : index
    %c0_25 = arith.constant 0 : index
    %35 = vector.load %arg5[%c0_24, %c0_25] : memref<32x32xbf16, #tpu.memory_space<vmem>>, vector<32x32xbf16>
    %cst_26 = arith.constant dense<0.000000e+00> : vector<8x32xf32>
    %36 = tpu.matmul %34, %35, %cst_26 {dimension_numbers = #tpu.dot_dimension_numbers<[1], [0], [0], [1], [0, 0, 1, 1], [], []>} : vector<8x32xbf16>, vector<32x32xbf16>, vector<8x32xf32> -> vector<8x32xf32>
    %c0_27 = arith.constant 0 : index
    %c0_28 = arith.constant 0 : index
    %37 = vector.load %arg6[%c0_27, %c0_28] : memref<1x32xf32, #tpu.memory_space<vmem>>, vector<1x32xf32>
    %38 = vector.broadcast %37 : vector<1x32xf32> to vector<8x32xf32>
    %39 = arith.addf %36, %38 : vector<8x32xf32>
    %cst_29 = arith.constant 0.000000e+00 : f32
    %40 = vector.broadcast %cst_29 : f32 to vector<8x32xf32>
    %41 = arith.maximumf %39, %40 : vector<8x32xf32>
    %c0_30 = arith.constant 0 : index
    %c0_31 = arith.constant 0 : index
    %42 = vector.load %arg7[%c0_30, %c0_31] : memref<1x32xf32, #tpu.memory_space<vmem>>, vector<1x32xf32>
    %43 = vector.broadcast %42 : vector<1x32xf32> to vector<8x32xf32>
    %44 = arith.mulf %41, %43 : vector<8x32xf32>
    %cst_32 = arith.constant dense<0.000000e+00> : vector<8xf32>
    %45 = vector.multi_reduction <add>, %44, %cst_32 [1] : vector<8x32xf32> to vector<8xf32>
    %46 = vector.shape_cast %45 : vector<8xf32> to vector<8x1xf32>
    %c0_33 = arith.constant 0 : index
    %47 = memref.load %arg8[%c0_33] : memref<1xf32, #tpu.memory_space<smem>>
    %48 = vector.broadcast %47 : f32 to vector<8x1xf32>
    %49 = arith.addf %46, %48 : vector<8x1xf32>
    %cst_34 = arith.constant 0.000000e+00 : f32
    %50 = vector.broadcast %cst_34 : f32 to vector<8x1xf32>
    %51 = arith.subf %50, %24 : vector<8x1xf32>
    %cst_35 = arith.constant 0.000000e+00 : f32
    %52 = vector.broadcast %cst_35 : f32 to vector<8x1xf32>
    %53 = arith.maximumf %51, %52 : vector<8x1xf32>
    %54 = math.absf %51 : vector<8x1xf32>
    %cst_36 = arith.constant 0.000000e+00 : f32
    %55 = vector.broadcast %cst_36 : f32 to vector<8x1xf32>
    %56 = arith.subf %55, %54 : vector<8x1xf32>
    %57 = math.exp %56 : vector<8x1xf32>
    %cst_37 = arith.constant 1.000000e+00 : f32
    %58 = vector.broadcast %cst_37 : f32 to vector<8x1xf32>
    %59 = arith.addf %58, %57 : vector<8x1xf32>
    %60 = math.log %59 : vector<8x1xf32>
    %61 = arith.addf %53, %60 : vector<8x1xf32>
    %cst_38 = arith.constant 1.000000e+02 : f32
    %62 = vector.broadcast %cst_38 : f32 to vector<8x1xf32>
    %63 = arith.minimumf %61, %62 : vector<8x1xf32>
    %cst_39 = arith.constant 0.000000e+00 : f32
    %64 = vector.broadcast %cst_39 : f32 to vector<8x1xf32>
    %65 = arith.maximumf %49, %64 : vector<8x1xf32>
    %66 = math.absf %49 : vector<8x1xf32>
    %cst_40 = arith.constant 0.000000e+00 : f32
    %67 = vector.broadcast %cst_40 : f32 to vector<8x1xf32>
    %68 = arith.subf %67, %66 : vector<8x1xf32>
    %69 = math.exp %68 : vector<8x1xf32>
    %cst_41 = arith.constant 1.000000e+00 : f32
    %70 = vector.broadcast %cst_41 : f32 to vector<8x1xf32>
    %71 = arith.addf %70, %69 : vector<8x1xf32>
    %72 = math.log %71 : vector<8x1xf32>
    %73 = arith.addf %65, %72 : vector<8x1xf32>
    %cst_42 = arith.constant 1.000000e+02 : f32
    %74 = vector.broadcast %cst_42 : f32 to vector<8x1xf32>
    %75 = arith.minimumf %73, %74 : vector<8x1xf32>
    %cst_43 = arith.constant 0.000000e+00 : f32
    %76 = vector.broadcast %cst_43 : f32 to vector<8x1xf32>
    %77 = arith.cmpf oge, %24, %76 : vector<8x1xf32>
    %78 = arith.extui %77 : vector<8x1xi1> to vector<8x1xi32>
    %79 = arith.sitofp %78 : vector<8x1xi32> to vector<8x1xf32>
    %cst_44 = arith.constant 0.000000e+00 : f32
    %80 = vector.broadcast %cst_44 : f32 to vector<8x1xf32>
    %81 = arith.cmpf olt, %49, %80 : vector<8x1xf32>
    %82 = arith.extui %81 : vector<8x1xi1> to vector<8x1xi32>
    %83 = arith.sitofp %82 : vector<8x1xi32> to vector<8x1xf32>
    %84 = vector.shape_cast %63 : vector<8x1xf32> to vector<1x8x1xf32>
    %cst_45 = arith.constant dense<0.000000e+00> : vector<1xf32>
    %85 = vector.multi_reduction <add>, %84, %cst_45 [1, 2] : vector<1x8x1xf32> to vector<1xf32>
    %86 = vector.shape_cast %85 : vector<1xf32> to vector<1x1x1xf32>
    %87 = vector.extract %86[0, 0, 0] : f32 from vector<1x1x1xf32>
    %88 = vector.shape_cast %75 : vector<8x1xf32> to vector<1x8x1xf32>
    %cst_46 = arith.constant dense<0.000000e+00> : vector<1xf32>
    %89 = vector.multi_reduction <add>, %88, %cst_46 [1, 2] : vector<1x8x1xf32> to vector<1xf32>
    %90 = vector.shape_cast %89 : vector<1xf32> to vector<1x1x1xf32>
    %91 = vector.extract %90[0, 0, 0] : f32 from vector<1x1x1xf32>
    %92 = vector.shape_cast %79 : vector<8x1xf32> to vector<1x8x1xf32>
    %cst_47 = arith.constant dense<0.000000e+00> : vector<1xf32>
    %93 = vector.multi_reduction <add>, %92, %cst_47 [1, 2] : vector<1x8x1xf32> to vector<1xf32>
    %94 = vector.shape_cast %93 : vector<1xf32> to vector<1x1x1xf32>
    %95 = vector.extract %94[0, 0, 0] : f32 from vector<1x1x1xf32>
    %96 = vector.shape_cast %83 : vector<8x1xf32> to vector<1x8x1xf32>
    %cst_48 = arith.constant dense<0.000000e+00> : vector<1xf32>
    %97 = vector.multi_reduction <add>, %96, %cst_48 [1, 2] : vector<1x8x1xf32> to vector<1xf32>
    %98 = vector.shape_cast %97 : vector<1xf32> to vector<1x1x1xf32>
    %99 = vector.extract %98[0, 0, 0] : f32 from vector<1x1x1xf32>
    %100 = tpu.iota {dimensions = array<i32: 1>} : vector<8x128xi32>
    %c0_i32 = arith.constant 0 : i32
    %101 = vector.broadcast %c0_i32 : i32 to vector<8x128xi32>
    %102 = arith.cmpi eq, %100, %101 : vector<8x128xi32>
    %c1_i32 = arith.constant 1 : i32
    %103 = vector.broadcast %c1_i32 : i32 to vector<8x128xi32>
    %104 = arith.cmpi eq, %100, %103 : vector<8x128xi32>
    %c2_i32 = arith.constant 2 : i32
    %105 = vector.broadcast %c2_i32 : i32 to vector<8x128xi32>
    %106 = arith.cmpi eq, %100, %105 : vector<8x128xi32>
    %c3_i32 = arith.constant 3 : i32
    %107 = vector.broadcast %c3_i32 : i32 to vector<8x128xi32>
    %108 = arith.cmpi eq, %100, %107 : vector<8x128xi32>
    %cst_49 = arith.constant 0.000000e+00 : f32
    %109 = vector.broadcast %99 : f32 to vector<8x128xf32>
    %110 = vector.broadcast %cst_49 : f32 to vector<8x128xf32>
    %111 = arith.select %108, %109, %110 : vector<8x128xi1>, vector<8x128xf32>
    %112 = vector.broadcast %95 : f32 to vector<8x128xf32>
    %113 = arith.select %106, %112, %111 : vector<8x128xi1>, vector<8x128xf32>
    %114 = vector.broadcast %91 : f32 to vector<8x128xf32>
    %115 = arith.select %104, %114, %113 : vector<8x128xi1>, vector<8x128xf32>
    %116 = vector.broadcast %87 : f32 to vector<8x128xf32>
    %117 = arith.select %102, %116, %115 : vector<8x128xi1>, vector<8x128xf32>
    %c0_i32_50 = arith.constant 0 : i32
    %118 = arith.cmpi eq, %arg0, %c0_i32_50 : i32
    %119 = arith.extui %118 : i1 to i32
    %c0_i32_51 = arith.constant 0 : i32
    %120 = arith.cmpi ne, %119, %c0_i32_51 : i32
    scf.if %120 {
      %cst_56 = arith.constant 0.000000e+00 : f32
      %124 = vector.broadcast %cst_56 : f32 to vector<8x128xf32>
      %c0_57 = arith.constant 0 : index
      %c0_58 = arith.constant 0 : index
      %125 = vector.load %arg9[%c0_57, %c0_58] : memref<8x128xf32, #tpu.memory_space<vmem>>, vector<8x128xf32>
      tpu.vector_store %arg9[%c0_57, %c0_58], %124 {strides = array<i32>} : memref<8x128xf32, #tpu.memory_space<vmem>>, vector<8x128xf32>,
    } else {
    }
    %c0_52 = arith.constant 0 : index
    %c0_53 = arith.constant 0 : index
    %121 = vector.load %arg9[%c0_52, %c0_53] : memref<8x128xf32, #tpu.memory_space<vmem>>, vector<8x128xf32>
    %122 = arith.addf %121, %117 : vector<8x128xf32>
    %c0_54 = arith.constant 0 : index
    %c0_55 = arith.constant 0 : index
    %123 = vector.load %arg9[%c0_54, %c0_55] : memref<8x128xf32, #tpu.memory_space<vmem>>, vector<8x128xf32>
    tpu.vector_store %arg9[%c0_54, %c0_55], %122 {strides = array<i32>} : memref<8x128xf32, #tpu.memory_space<vmem>>, vector<8x128xf32>,
    return
  }
  func.func @transform_0(%arg0: i32) -> (i32, i32) {
    %c0_i32 = arith.constant 0 : i32
    %c0_i32_0 = arith.constant 0 : i32
    return %arg0, %c0_i32 : i32, i32
  }
  func.func @transform_1(%arg0: i32) -> (i32, i32) {
    %c0_i32 = arith.constant 0 : i32
    %c0_i32_0 = arith.constant 0 : i32
    return %arg0, %c0_i32 : i32, i32
  }
  func.func @transform_2(%arg0: i32) -> (i32, i32) {
    %c0_i32 = arith.constant 0 : i32
    %c0_i32_0 = arith.constant 0 : i32
    %c0_i32_1 = arith.constant 0 : i32
    return %c0_i32, %c0_i32_0 : i32, i32
  }
  func.func @transform_3(%arg0: i32) -> (i32, i32) {
    %c0_i32 = arith.constant 0 : i32
    %c0_i32_0 = arith.constant 0 : i32
    %c0_i32_1 = arith.constant 0 : i32
    return %c0_i32, %c0_i32_0 : i32, i32
  }
  func.func @transform_4(%arg0: i32) -> (i32, i32) {
    %c0_i32 = arith.constant 0 : i32
    %c0_i32_0 = arith.constant 0 : i32
    %c0_i32_1 = arith.constant 0 : i32
    return %c0_i32, %c0_i32_0 : i32, i32
  }
  func.func @transform_5(%arg0: i32) -> (i32, i32) {
    %c0_i32 = arith.constant 0 : i32
    %c0_i32_0 = arith.constant 0 : i32
    %c0_i32_1 = arith.constant 0 : i32
    return %c0_i32, %c0_i32_0 : i32, i32
  }
  func.func @transform_6(%arg0: i32) -> (i32, i32) {
    %c0_i32 = arith.constant 0 : i32
    %c0_i32_0 = arith.constant 0 : i32
    %c0_i32_1 = arith.constant 0 : i32
    return %c0_i32, %c0_i32_0 : i32, i32
  }
  func.func @transform_7(%arg0: i32) -> i32 {
    %c0_i32 = arith.constant 0 : i32
    %c0_i32_0 = arith.constant 0 : i32
    return %c0_i32 : i32
  }
  func.func @transform_8(%arg0: i32) -> (i32, i32) {
    %c0_i32 = arith.constant 0 : i32
    %c0_i32_0 = arith.constant 0 : i32
    %c0_i32_1 = arith.constant 0 : i32
    return %c0_i32, %c0_i32_0 : i32, i32
  }
}

</mosaic_0001>

<llo_original>
// kernel: tpu_custom_call.1
$region0: #{tpu_custom_call.1}
  #allocation0 [shape = 'u32[]', space=smem, size = 0x4, offset = 0x4, fixed_abs, tag = 'smem constant byte address 0x4 - core index']
  #allocation1 [shape = 'u32[144,128]{1,0:T(1,128)}', space=vmem, size = 0x12000, scoped, tag = 'internal scratch']
  #allocation2 [shape = 'f32[1]{0:T(128)S(6)}', space=smem, size = 0x200, scoped, tag = 'scoped memory for tpu_custom_call.1']
  %s0 = inlined_call_operand.hbm [shape: f32[16,32], index: 0, kind: input, shape index: {}]
  %s1 = inlined_call_operand.hbm [shape: f32[16,32], index: 1, kind: input, shape index: {}]
  %s2 = inlined_call_operand.hbm [shape: bf16[32,32], index: 2, kind: input, shape index: {}]
  %s3 = inlined_call_operand.vmem [shape: f32[1,32], index: 3, kind: input, shape index: {}]
  %s4 = inlined_call_operand.vmem [shape: bf16[32,32], index: 4, kind: input, shape index: {}]
  %s5 = inlined_call_operand.vmem [shape: f32[1,32], index: 5, kind: input, shape index: {}]
  %s6 = inlined_call_operand.vmem [shape: f32[1,32], index: 6, kind: input, shape index: {}]
  %s7 = inlined_call_operand.<no memory space> [shape: f32[1], index: 7, kind: input, shape index: {}]
  %s8 = inlined_call_operand.hbm [shape: f32[8,128], index: 8, kind: output, shape index: {}]
  %s9 = sld [smem:[#allocation0]]
  $region81: #{tpu_custom_call.1} parent=0
    _
  %s11 = ssub.s32 1, %s9
  %s12 = scalar_select 0, %s11, %s9
  %13 = sst [smem:[#allocation2]] %s7
  $region1: #{tpu_custom_call.1} parent=0
    #allocation3 [shape = 'u8[8192]{0}', space=vmem, size = 0x2000, scoped, tag = 'input window, operand 0']
    #allocation4 [shape = 's32[2]{0}', space=sflag, size = 0x8, scoped, tag = 'scoped memory for tpu_custom_call.1']
    #allocation5 [shape = 's32[2]{0}', space=sflag, size = 0x8, scoped, tag = 'scoped memory for tpu_custom_call.1']
    #allocation6 [shape = 'u8[8192]{0}', space=vmem, size = 0x2000, scoped, tag = 'input window, operand 1']
    #allocation7 [shape = 's32[2]{0}', space=sflag, size = 0x8, scoped, tag = 'scoped memory for tpu_custom_call.1']
    #allocation8 [shape = 'u8[8192]{0}', space=vmem, size = 0x2000, scoped, tag = 'input window, operand 2, single buffered']
    #allocation9 [shape = 'u8[4096]{0}', space=vmem, size = 0x1000, scoped, tag = 'output window, operand 0, single buffered']
    %14 = vsyncpa [#allocation4], 0
    %s15 = scalar_lea.sflag [#allocation4], 1
    %16 = vsyncpa %s15, 0
    %17 = vsyncpa [#allocation7], 0
    %s18 = scalar_lea.sflag [#allocation7], 1
    %19 = vsyncpa %s18, 0
    %20 = vsyncpa [#allocation5], 0
    loop: start=0, step=1, limit=4
    $region2: #{tpu_custom_call.1} parent=1 // loop_pre_header
      _
    $region3: #{tpu_custom_call.1} parent=1 // loop_header
      %s22 = sphi 0, %s26
      %p23 = scmp.ge.s32.totalorder %s22, 4
      %s32 = sphi 0, %s34
      %s35 = sphi 0, %s32
      %s36 = sphi 0, %s35
      %s52 = sphi 0, %s36
      %s58 = sphi 0, %s60
      %s61 = sphi 0, %s58
      %s62 = sphi 0, %s61
      %s78 = sphi 0, %s62
      %s82 = sphi 0, %s82
      %s84 = sphi 0, %s82
      %s85 = sphi 0, %s84
      %s99 = sphi 0, %s85
      %s103 = sphi 0, %s103
      %s105 = sphi 0, %s103
      %s106 = sphi 0, %s105
      %s120 = sphi 0, %s106
      %s124 = sphi 0, %s124
      %s126 = sphi 0, %s124
      %s127 = sphi 0, %s126
      %s141 = sphi 0, %s127
      %s145 = sphi 0, %s145
      %s147 = sphi 0, %s145
      %s148 = sphi 0, %s147
      %s162 = sphi 0, %s148
      %s166 = sphi 0, %s166
      %s168 = sphi 0, %s166
      %s169 = sphi 0, %s168
      %s183 = sphi 0, %s169
      %s187 = sphi 0, %s187
      %s189 = sphi 0, %s187
      %s190 = sphi 0, %s189
      %s204 = sphi 0, %s190
      %s208 = sphi 0, %s208
      %s210 = sphi 0, %s208
      %s211 = sphi 0, %s210
      %s225 = sphi 0, %s211
    $region4: #{tpu_custom_call.1} parent=1 // loop_header_branch
      %25 = sbr.rel (%p23) target = $region8
    $region5: #{tpu_custom_call.1} parent=1 // loop_body
      %s27 = ssub.s32 %s22, 1
      %s28 = ssub.s32 %s22, 2
      %s29 = sadd.s32 %s22, 1
      %s30 = ssub.s32 %s22, %s29
      %p31 = scmp.eq.s32.totalorder %s30, 0
      %s33 = sadd.s32 %s32, 1
      %s34 = scalar_select %p31, %s32, %s33
      %p37 = pneg %p31
      %p38 = scmp.eq.s32.totalorder %s22, 1
      %p39 = por %p37, %p38
      %p40 = scmp.ne.s32.totalorder %s32, %s35
      %p41 = scmp.eq.s32.totalorder %s22, 0
      %p42 = por %p40, %p41
      %p43 = scmp.ne.s32.totalorder %s32, %s35
      %p44 = scmp.eq.s32.totalorder %s27, 1
      %p45 = por %p43, %p44
      %p46 = scmp.ne.s32.totalorder %s35, %s36
      %p47 = scmp.eq.s32.totalorder %s27, 0
      %p48 = por %p46, %p47
      %p49 = scmp.ne.s32.totalorder %s35, %s36
      %p50 = scmp.eq.s32.totalorder %s28, 1
      %p51 = por %p49, %p50
      %p53 = scmp.ne.s32.totalorder %s36, %s52
      %p54 = scmp.eq.s32.totalorder %s28, 0
      %p55 = por %p53, %p54
      %s56 = ssub.s32 %s22, %s29
      %p57 = scmp.eq.s32.totalorder %s56, 0
      %s59 = sadd.s32 %s58, 1
      %s60 = scalar_select %p57, %s58, %s59
      %p63 = pneg %p57
      %p64 = scmp.eq.s32.totalorder %s22, 1
      %p65 = por %p63, %p64
      %p66 = scmp.ne.s32.totalorder %s58, %s61
      %p67 = scmp.eq.s32.totalorder %s22, 0
      %p68 = por %p66, %p67
      %p69 = scmp.ne.s32.totalorder %s58, %s61
      %p70 = scmp.eq.s32.totalorder %s27, 1
      %p71 = por %p69, %p70
      %p72 = scmp.ne.s32.totalorder %s61, %s62
      %p73 = scmp.eq.s32.totalorder %s27, 0
      %p74 = por %p72, %p73
      %p75 = scmp.ne.s32.totalorder %s61, %s62
      %p76 = scmp.eq.s32.totalorder %s28, 1
      %p77 = por %p75, %p76
      %p79 = scmp.ne.s32.totalorder %s62, %s78
      %p80 = scmp.eq.s32.totalorder %s28, 0
      %p81 = por %p79, %p80
      %s83 = sadd.s32 %s82, 1
      %p86 = scmp.eq.s32.totalorder %s22, 1
      %p87 = scmp.ne.s32.totalorder %s82, %s84
      %p88 = scmp.eq.s32.totalorder %s22, 0
      %p89 = por %p87, %p88
      %p90 = scmp.ne.s32.totalorder %s82, %s84
      %p91 = scmp.eq.s32.totalorder %s27, 1
      %p92 = por %p90, %p91
      %p93 = scmp.ne.s32.totalorder %s84, %s85
      %p94 = scmp.eq.s32.totalorder %s27, 0
      %p95 = por %p93, %p94
      %p96 = scmp.ne.s32.totalorder %s84, %s85
      %p97 = scmp.eq.s32.totalorder %s28, 1
      %p98 = por %p96, %p97
      %p100 = scmp.ne.s32.totalorder %s85, %s99
      %p101 = scmp.eq.s32.totalorder %s28, 0
      %p102 = por %p100, %p101
      %s104 = sadd.s32 %s103, 1
      %p107 = scmp.eq.s32.totalorder %s22, 1
      %p108 = scmp.ne.s32.totalorder %s103, %s105
      %p109 = scmp.eq.s32.totalorder %s22, 0
      %p110 = por %p108, %p109
      %p111 = scmp.ne.s32.totalorder %s103, %s105
      %p112 = scmp.eq.s32.totalorder %s27, 1
      %p113 = por %p111, %p112
      %p114 = scmp.ne.s32.totalorder %s105, %s106
      %p115 = scmp.eq.s32.totalorder %s27, 0
      %p116 = por %p114, %p115
      %p117 = scmp.ne.s32.totalorder %s105, %s106
      %p118 = scmp.eq.s32.totalorder %s28, 1
      %p119 = por %p117, %p118
      %p121 = scmp.ne.s32.totalorder %s106, %s120
      %p122 = scmp.eq.s32.totalorder %s28, 0
      %p123 = por %p121, %p122
      %s125 = sadd.s32 %s124, 1
      %p128 = scmp.eq.s32.totalorder %s22, 1
      %p129 = scmp.ne.s32.totalorder %s124, %s126
      %p130 = scmp.eq.s32.totalorder %s22, 0
      %p131 = por %p129, %p130
      %p132 = scmp.ne.s32.totalorder %s124, %s126
      %p133 = scmp.eq.s32.totalorder %s27, 1
      %p134 = por %p132, %p133
      %p135 = scmp.ne.s32.totalorder %s126, %s127
      %p136 = scmp.eq.s32.totalorder %s27, 0
      %p137 = por %p135, %p136
      %p138 = scmp.ne.s32.totalorder %s126, %s127
      %p139 = scmp.eq.s32.totalorder %s28, 1
      %p140 = por %p138, %p139
      %p142 = scmp.ne.s32.totalorder %s127, %s141
      %p143 = scmp.eq.s32.totalorder %s28, 0
      %p144 = por %p142, %p143
      %s146 = sadd.s32 %s145, 1
      %p149 = scmp.eq.s32.totalorder %s22, 1
      %p150 = scmp.ne.s32.totalorder %s145, %s147
      %p151 = scmp.eq.s32.totalorder %s22, 0
      %p152 = por %p150, %p151
      %p153 = scmp.ne.s32.totalorder %s145, %s147
      %p154 = scmp.eq.s32.totalorder %s27, 1
      %p155 = por %p153, %p154
      %p156 = scmp.ne.s32.totalorder %s147, %s148
      %p157 = scmp.eq.s32.totalorder %s27, 0
      %p158 = por %p156, %p157
      %p159 = scmp.ne.s32.totalorder %s147, %s148
      %p160 = scmp.eq.s32.totalorder %s28, 1
      %p161 = por %p159, %p160
      %p163 = scmp.ne.s32.totalorder %s148, %s162
      %p164 = scmp.eq.s32.totalorder %s28, 0
      %p165 = por %p163, %p164
      %s167 = sadd.s32 %s166, 1
      %p170 = scmp.eq.s32.totalorder %s22, 1
      %p171 = scmp.ne.s32.totalorder %s166, %s168
      %p172 = scmp.eq.s32.totalorder %s22, 0
      %p173 = por %p171, %p172
      %p174 = scmp.ne.s32.totalorder %s166, %s168
      %p175 = scmp.eq.s32.totalorder %s27, 1
      %p176 = por %p174, %p175
      %p177 = scmp.ne.s32.totalorder %s168, %s169
      %p178 = scmp.eq.s32.totalorder %s27, 0
      %p179 = por %p177, %p178
      %p180 = scmp.ne.s32.totalorder %s168, %s169
      %p181 = scmp.eq.s32.totalorder %s28, 1
      %p182 = por %p180, %p181
      %p184 = scmp.ne.s32.totalorder %s169, %s183
      %p185 = scmp.eq.s32.totalorder %s28, 0
      %p186 = por %p184, %p185
      %s188 = sadd.s32 %s187, 1
      %p191 = scmp.eq.s32.totalorder %s22, 1
      %p192 = scmp.ne.s32.totalorder %s187, %s189
      %p193 = scmp.eq.s32.totalorder %s22, 0
      %p194 = por %p192, %p193
      %p195 = scmp.ne.s32.totalorder %s187, %s189
      %p196 = scmp.eq.s32.totalorder %s27, 1
      %p197 = por %p195, %p196
      %p198 = scmp.ne.s32.totalorder %s189, %s190
      %p199 = scmp.eq.s32.totalorder %s27, 0
      %p200 = por %p198, %p199
      %p201 = scmp.ne.s32.totalorder %s189, %s190
      %p202 = scmp.eq.s32.totalorder %s28, 1
      %p203 = por %p201, %p202
      %p205 = scmp.ne.s32.totalorder %s190, %s204
      %p206 = scmp.eq.s32.totalorder %s28, 0
      %p207 = por %p205, %p206
      %s209 = sadd.s32 %s208, 1
      %p212 = scmp.eq.s32.totalorder %s22, 1
      %p213 = scmp.ne.s32.totalorder %s208, %s210
      %p214 = scmp.eq.s32.totalorder %s22, 0
      %p215 = por %p213, %p214
      %p216 = scmp.ne.s32.totalorder %s208, %s210
      %p217 = scmp.eq.s32.totalorder %s27, 1
      %p218 = por %p216, %p217
      %p219 = scmp.ne.s32.totalorder %s210, %s211
      %p220 = scmp.eq.s32.totalorder %s27, 0
      %p221 = por %p219, %p220
      %p222 = scmp.ne.s32.totalorder %s210, %s211
      %p223 = scmp.eq.s32.totalorder %s28, 1
      %p224 = por %p222, %p223
      %p226 = scmp.ne.s32.totalorder %s211, %s225
      %p227 = scmp.eq.s32.totalorder %s28, 0
      %p228 = por %p226, %p227
      %p229 = scmp.le.s32.totalorder 1, %s22
      %p230 = scmp.lt.s32.totalorder %s22, 3
      %p231 = pnand %p229, %p230
      %p232 = pneg %p231
      // Predicated region
      $region9: #{tpu_custom_call.1} parent=5 // pred_check
        _
      $region10: #{tpu_custom_call.1} parent=5 // pred_check_branch
        %234 = sbr.rel (%p231) target = $region12
      $region11: #{tpu_custom_call.1} parent=5 // pred_region
        %s235 = ssub.s32 %s22, 1
        // Predicated region
        $region13: #{tpu_custom_call.1} parent=11 // pred_check
          %p236 = pneg %p95
        $region14: #{tpu_custom_call.1} parent=11 // pred_check_branch
          %238 = sbr.rel (%p236) target = $region16
        $region15: #{tpu_custom_call.1} parent=11 // pred_region
          %s240 = ssub.s32 256, 256
          %241 = vsyncadd [#allocation7], %s240
          %s242 = sshll.u32 [#allocation8], 4
          %s243 = int_to_ptr.vmem [resolvable:$true] %s242
          %248 = dma.hbm_to_vmem [thread:$0]  %s2, 256, %s243, [#allocation7], 64, 64, 4
        $region16: #{tpu_custom_call.1} parent=11 // pred_fallthru
          _
        // Predicated region
        $region17: #{tpu_custom_call.1} parent=11 // pred_check
          %p249 = pneg %p116
        $region18: #{tpu_custom_call.1} parent=11 // pred_check_branch
          %251 = sbr.rel (%p249) target = $region20
        $region19: #{tpu_custom_call.1} parent=11 // pred_region
          _
        $region20: #{tpu_custom_call.1} parent=11 // pred_fallthru
          _
        // Predicated region
        $region21: #{tpu_custom_call.1} parent=11 // pred_check
          %p252 = pneg %p137
        $region22: #{tpu_custom_call.1} parent=11 // pred_check_branch
          %254 = sbr.rel (%p252) target = $region24
        $region23: #{tpu_custom_call.1} parent=11 // pred_region
          _
        $region24: #{tpu_custom_call.1} parent=11 // pred_fallthru
          _
        // Predicated region
        $region25: #{tpu_custom_call.1} parent=11 // pred_check
          %p255 = pneg %p158
        $region26: #{tpu_custom_call.1} parent=11 // pred_check_branch
          %257 = sbr.rel (%p255) target = $region28
        $region27: #{tpu_custom_call.1} parent=11 // pred_region
          _
        $region28: #{tpu_custom_call.1} parent=11 // pred_fallthru
          _
        // Predicated region
        $region29: #{tpu_custom_call.1} parent=11 // pred_check
          %p258 = pneg %p179
        $region30: #{tpu_custom_call.1} parent=11 // pred_check_branch
          %260 = sbr.rel (%p258) target = $region32
        $region31: #{tpu_custom_call.1} parent=11 // pred_region
          _
        $region32: #{tpu_custom_call.1} parent=11 // pred_fallthru
          _
        // Predicated region
        $region33: #{tpu_custom_call.1} parent=11 // pred_check
          %p261 = pneg %p200
        $region34: #{tpu_custom_call.1} parent=11 // pred_check_branch
          %263 = sbr.rel (%p261) target = $region36
        $region35: #{tpu_custom_call.1} parent=11 // pred_region
          _
        $region36: #{tpu_custom_call.1} parent=11 // pred_fallthru
          _
      $region12: #{tpu_custom_call.1} parent=5 // pred_fallthru
        _
      %p264 = scmp.lt.s32.totalorder %s22, 2
      // Predicated region
      $region37: #{tpu_custom_call.1} parent=5 // pred_check
        %p265 = pneg %p264
      $region38: #{tpu_custom_call.1} parent=5 // pred_check_branch
        %267 = sbr.rel (%p265) target = $region40
      $region39: #{tpu_custom_call.1} parent=5 // pred_region
        // Predicated region
        $region41: #{tpu_custom_call.1} parent=39 // pred_check
          %p268 = pneg %p42
        $region42: #{tpu_custom_call.1} parent=39 // pred_check_branch
          %270 = sbr.rel (%p268) target = $region44
        $region43: #{tpu_custom_call.1} parent=39 // pred_region
          %s271 = sand.u32 %s32, 1
          %s272 = scalar_lea.sflag [#allocation4], %s271
          %s273 = sand.u32 %s32, 1
          %s274 = smul.addr %s273, 8
          %s275 = scalar_lea.vmem [#allocation3], %s274
          %s277 = ssub.s32 128, 128
          %278 = vsyncadd %s272, %s277
          %s279 = smul.addr %s22, 128
          %s280 = scalar_lea.hbm %s0, %s279
          %s282 = sshll.u32 %s275, 4
          %s283 = int_to_ptr.vmem [resolvable:$true] %s282
          %285 = dma.hbm_to_vmem [thread:$0]  %s280, 128, %s283, %s272
        $region44: #{tpu_custom_call.1} parent=39 // pred_fallthru
          _
        // Predicated region
        $region45: #{tpu_custom_call.1} parent=39 // pred_check
          %p286 = pneg %p68
        $region46: #{tpu_custom_call.1} parent=39 // pred_check_branch
          %288 = sbr.rel (%p286) target = $region48
        $region47: #{tpu_custom_call.1} parent=39 // pred_region
          %s289 = sand.u32 %s22, 1
          %s290 = scalar_lea.sflag [#allocation7], %s289
          %s291 = sand.u32 %s58, 1
          %s292 = smul.addr %s291, 8
          %s293 = scalar_lea.vmem [#allocation6], %s292
          %s295 = ssub.s32 128, 128
          %296 = vsyncadd %s290, %s295
          %s297 = smul.addr %s22, 128
          %s298 = scalar_lea.hbm %s1, %s297
          %s300 = sshll.u32 %s293, 4
          %s301 = int_to_ptr.vmem [resolvable:$true] %s300
          %303 = dma.hbm_to_vmem [thread:$0]  %s298, 128, %s301, %s290
        $region48: #{tpu_custom_call.1} parent=39 // pred_fallthru
          _
      $region40: #{tpu_custom_call.1} parent=5 // pred_fallthru
        _
      %p304 = scmp.le.s32.totalorder 1, %s22
      %p305 = scmp.lt.s32.totalorder %s22, 3
      %p306 = pnand %p304, %p305
      %p307 = pneg %p306
      // Predicated region
      $region49: #{tpu_custom_call.1} parent=5 // pred_check
        _
      $region50: #{tpu_custom_call.1} parent=5 // pred_check_branch
        %309 = sbr.rel (%p306) target = $region52
      $region51: #{tpu_custom_call.1} parent=5 // pred_region
        %s310 = ssub.s32 %s22, 1
        %s311 = sand.u32 %s35, 1
        %s312 = scalar_lea.sflag [#allocation4], %s311
        %s313 = sand.u32 %s35, 1
        %s314 = smul.addr %s313, 8
        %s315 = scalar_lea.vmem [#allocation3], %s314
        // Predicated region
        $region53: #{tpu_custom_call.1} parent=51 // pred_check
          %p316 = pneg %p48
        $region54: #{tpu_custom_call.1} parent=51 // pred_check_branch
          %318 = sbr.rel (%p316) target = $region56
        $region55: #{tpu_custom_call.1} parent=51 // pred_region
          %319 = dma.done %s312, 128
        $region56: #{tpu_custom_call.1} parent=51 // pred_fallthru
          _
        %s320 = sand.u32 %s27, 1
        %s321 = scalar_lea.sflag [#allocation7], %s320
        %s322 = sand.u32 %s61, 1
        %s323 = smul.addr %s322, 8
        %s324 = scalar_lea.vmem [#allocation6], %s323
        // Predicated region
        $region57: #{tpu_custom_call.1} parent=51 // pred_check
          %p325 = pneg %p74
        $region58: #{tpu_custom_call.1} parent=51 // pred_check_branch
          %327 = sbr.rel (%p325) target = $region60
        $region59: #{tpu_custom_call.1} parent=51 // pred_region
          %328 = dma.done %s321, 128
        $region60: #{tpu_custom_call.1} parent=51 // pred_fallthru
          _
        // Predicated region
        $region61: #{tpu_custom_call.1} parent=51 // pred_check
          %p329 = pneg %p95
        $region62: #{tpu_custom_call.1} parent=51 // pred_check_branch
          %331 = sbr.rel (%p329) target = $region64
        $region63: #{tpu_custom_call.1} parent=51 // pred_region
          %332 = dma.done [#allocation7], 256
        $region64: #{tpu_custom_call.1} parent=51 // pred_fallthru
          _
        %s333 = sand.u32 %s35, 1
        %s334 = scalar_lea.sflag [#allocation4], %s333
        %s335 = sand.u32 %s35, 1
        %s336 = smul.addr %s335, 8
        %s337 = scalar_lea.vmem [#allocation3], %s336
        %p338 = pneg %p48
        %p339 = pneg %p45
        %s340 = sand.u32 %s27, 1
        %s341 = scalar_lea.sflag [#allocation7], %s340
        %s342 = sand.u32 %s61, 1
        %s343 = smul.addr %s342, 8
        %s344 = scalar_lea.vmem [#allocation6], %s343
        %p345 = pneg %p74
        %p346 = pneg %p71
        %p347 = pneg %p95
        %p348 = pneg %p92
        %p349 = pneg %p116
        %p350 = pneg %p113
        %p351 = pneg %p137
        %p352 = pneg %p134
        %p353 = pneg %p158
        %p354 = pneg %p155
        %p355 = pneg %p179
        %p356 = pneg %p176
        %p357 = pneg %p200
        %p358 = pneg %p197
        %p359 = pneg %p221
        %p360 = pneg %p218
        %v362 = vld [vmem:[%s315] sm:$0xff]
        %v363 = vpack.c.bf16 %v362, %v362
        %v364 = vld [vmem:[#allocation8] sm:$0xf]
        %v365 = vld [vmem:[#allocation8 + $0x4] sm:$0xf]
        %v366 = vld [vmem:[#allocation8 + $0x8] sm:$0xf]
        %v367 = vld [vmem:[#allocation8 + $0xc] sm:$0xf]
        %v368 = vld [vmem:[%s3] sm:$0x1]
        %v370 = vlaneseq
        %v371 = vshrl.u32 %v370, 7
        %v372 = vsub.s32 0, %v371
        %v373 = vrot.slane %v368, %v372
        %v379 = vunpack.c.l.b16 %v364
        %v380 = vunpack.c.l.b16 %v365
        %v381 = vunpack.c.l.b16 %v366
        %v382 = vunpack.c.l.b16 %v367
        %v383 = vpack.c.b16 %v380, %v379
        %v384 = vpack.c.b16 %v382, %v381
        %vm387 = vcmask 261120
        %v389 = vsel %vm387, %v363, 0
        %391 = vmatprep.subr.bf16.mxu0 0
        %392 = vmatpush1.bf16.msra.mxu0 %v383
        %393 = vmatprep.subr.bf16.mxu0 0
        %394 = vmatpush1.bf16.msra.mxu0 %v384
        %395 = vmatprep.subr.bf16.mxu0 0
        %396 = vmatpush1.bf16.msra.mxu0 0
        %397 = vmatprep.subr.bf16.mxu0 0
        %398 = vmatpush1.bf16.msra.mxu0 0
        %399 = vmatprep.subr.bf16.mxu0 0
        %400 = vmatpush1.bf16.msra.mxu0 0
        %401 = vmatprep.subr.bf16.mxu0 0
        %402 = vmatpush1.bf16.msra.mxu0 0
        %403 = vmatprep.subr.bf16.mxu0 0
        %404 = vmatpush1.bf16.msra.mxu0 0
        %405 = vmatprep.subr.bf16.mxu0 0
        %406 = vmatpush1.bf16.msra.mxu0 0
        %407 = vmatprep.subr.bf16.mxu0 0
        %408 = vmatpush1.bf16.msra.mxu0 0
        %409 = vmatprep.subr.bf16.mxu0 0
        %410 = vmatpush1.bf16.msra.mxu0 0
        %411 = vmatprep.subr.bf16.mxu0 0
        %412 = vmatpush1.bf16.msra.mxu0 0
        %413 = vmatprep.subr.bf16.mxu0 0
        %414 = vmatpush1.bf16.msra.mxu0 0
        %415 = vmatprep.subr.bf16.mxu0 0
        %416 = vmatpush1.bf16.msra.mxu0 0
        %417 = vmatprep.subr.bf16.mxu0 0
        %418 = vmatpush1.bf16.msra.mxu0 0
        %419 = vmatprep.subr.bf16.mxu0 0
        %420 = vmatpush1.bf16.msra.mxu0 0
        %421 = vmatprep.subr.bf16.mxu0 0
        %422 = vmatpush1.bf16.msra.mxu0 0
        %423 = vmatprep.mubr.bf16.mxu0 0
        %424 = vmatmul.mubr.bf16.gmra.mrb[0].mxu0 %v389
        %v425 = vpop.f32.mrb[0].mxu0
        %v426 = vadd.f32 %v373, %v425
        %v427 = vpop.f32.mrb[0].mxu0
        %v428 = vpop.f32.mrb[0].mxu0
        %v429 = vpop.f32.mrb[0].mxu0
        %430 = vdwg.mxu0
        %v431 = vmax.f32 %v426, 0.0
        %v432 = vpack.c.bf16 %v431, %v431
        %v433 = vld [vmem:[%s4] sm:$0xf]
        %v434 = vld [vmem:[%s4 + $0x4] sm:$0xf]
        %v435 = vld [vmem:[%s4 + $0x8] sm:$0xf]
        %v436 = vld [vmem:[%s4 + $0xc] sm:$0xf]
        %v437 = vld [vmem:[%s5] sm:$0x1]
        %v439 = vlaneseq
        %v440 = vshrl.u32 %v439, 7
        %v441 = vsub.s32 0, %v440
        %v442 = vrot.slane %v437, %v441
        %v448 = vunpack.c.l.b16 %v433
        %v449 = vunpack.c.l.b16 %v434
        %v450 = vunpack.c.l.b16 %v435
        %v451 = vunpack.c.l.b16 %v436
        %v452 = vpack.c.b16 %v449, %v448
        %v453 = vpack.c.b16 %v451, %v450
        %v457 = vsel %vm387, %v432, 0
        %459 = vmatprep.subr.bf16.mxu0 0
        %460 = vmatpush1.bf16.msra.mxu0 %v452
        %461 = vmatprep.subr.bf16.mxu0 0
        %462 = vmatpush1.bf16.msra.mxu0 %v453
        %463 = vmatprep.subr.bf16.mxu0 0
        %464 = vmatpush1.bf16.msra.mxu0 0
        %465 = vmatprep.subr.bf16.mxu0 0
        %466 = vmatpush1.bf16.msra.mxu0 0
        %467 = vmatprep.subr.bf16.mxu0 0
        %468 = vmatpush1.bf16.msra.mxu0 0
        %469 = vmatprep.subr.bf16.mxu0 0
        %470 = vmatpush1.bf16.msra.mxu0 0
        %471 = vmatprep.subr.bf16.mxu0 0
        %472 = vmatpush1.bf16.msra.mxu0 0
        %473 = vmatprep.subr.bf16.mxu0 0
        %474 = vmatpush1.bf16.msra.mxu0 0
        %475 = vmatprep.subr.bf16.mxu0 0
        %476 = vmatpush1.bf16.msra.mxu0 0
        %477 = vmatprep.subr.bf16.mxu0 0
        %478 = vmatpush1.bf16.msra.mxu0 0
        %479 = vmatprep.subr.bf16.mxu0 0
        %480 = vmatpush1.bf16.msra.mxu0 0
        %481 = vmatprep.subr.bf16.mxu0 0
        %482 = vmatpush1.bf16.msra.mxu0 0
        %483 = vmatprep.subr.bf16.mxu0 0
        %484 = vmatpush1.bf16.msra.mxu0 0
        %485 = vmatprep.subr.bf16.mxu0 0
        %486 = vmatpush1.bf16.msra.mxu0 0
        %487 = vmatprep.subr.bf16.mxu0 0
        %488 = vmatpush1.bf16.msra.mxu0 0
        %489 = vmatprep.subr.bf16.mxu0 0
        %490 = vmatpush1.bf16.msra.mxu0 0
        %491 = vmatprep.mubr.bf16.mxu0 0
        %492 = vmatmul.mubr.bf16.gmra.mrb[0].mxu0 %v457
        %v493 = vpop.f32.mrb[0].mxu0
        %v494 = vadd.f32 %v442, %v493
        %v495 = vpop.f32.mrb[0].mxu0
        %v496 = vpop.f32.mrb[0].mxu0
        %v497 = vpop.f32.mrb[0].mxu0
        %498 = vdwg.mxu0
        %v499 = vmax.f32 %v494, 0.0
        %v500 = vld [vmem:[%s6] sm:$0x1]
        %v502 = vlaneseq
        %v503 = vshrl.u32 %v502, 7
        %v504 = vsub.s32 0, %v503
        %v505 = vrot.slane %v500, %v504
        %v507 = vmul.f32 %v499, %v505
        %v508 = vsel %vm387, %v507, 0.0
        %509 = vadd.xlane.f32.xlu0 %v508
        %v510 = vpop.xlane.xlu0 %509
        %s511 = sld [smem:[#allocation2]]
        %v512 = vstv %s511
        %v513 = vadd.f32 %v510, %v512
        %v514 = vld [vmem:[%s324] sm:$0xff]
        %v515 = vpack.c.bf16 %v514, %v514
        %v517 = vsel %vm387, %v515, 0
        %519 = vmatprep.subr.bf16.mxu0 0
        %520 = vmatpush1.bf16.msra.mxu0 %v383
        %521 = vmatprep.subr.bf16.mxu0 0
        %522 = vmatpush1.bf16.msra.mxu0 %v384
        %523 = vmatprep.subr.bf16.mxu0 0
        %524 = vmatpush1.bf16.msra.mxu0 0
        %525 = vmatprep.subr.bf16.mxu0 0
        %526 = vmatpush1.bf16.msra.mxu0 0
        %527 = vmatprep.subr.bf16.mxu0 0
        %528 = vmatpush1.bf16.msra.mxu0 0
        %529 = vmatprep.subr.bf16.mxu0 0
        %530 = vmatpush1.bf16.msra.mxu0 0
        %531 = vmatprep.subr.bf16.mxu0 0
        %532 = vmatpush1.bf16.msra.mxu0 0
        %533 = vmatprep.subr.bf16.mxu0 0
        %534 = vmatpush1.bf16.msra.mxu0 0
        %535 = vmatprep.subr.bf16.mxu0 0
        %536 = vmatpush1.bf16.msra.mxu0 0
        %537 = vmatprep.subr.bf16.mxu0 0
        %538 = vmatpush1.bf16.msra.mxu0 0
        %539 = vmatprep.subr.bf16.mxu0 0
        %540 = vmatpush1.bf16.msra.mxu0 0
        %541 = vmatprep.subr.bf16.mxu0 0
        %542 = vmatpush1.bf16.msra.mxu0 0
        %543 = vmatprep.subr.bf16.mxu0 0
        %544 = vmatpush1.bf16.msra.mxu0 0
        %545 = vmatprep.subr.bf16.mxu0 0
        %546 = vmatpush1.bf16.msra.mxu0 0
        %547 = vmatprep.subr.bf16.mxu0 0
        %548 = vmatpush1.bf16.msra.mxu0 0
        %549 = vmatprep.subr.bf16.mxu0 0
        %550 = vmatpush1.bf16.msra.mxu0 0
        %551 = vmatprep.mubr.bf16.mxu0 0
        %552 = vmatmul.mubr.bf16.gmra.mrb[0].mxu0 %v517
        %v553 = vpop.f32.mrb[0].mxu0
        %v554 = vadd.f32 %v373, %v553
        %v555 = vpop.f32.mrb[0].mxu0
        %v556 = vpop.f32.mrb[0].mxu0
        %v557 = vpop.f32.mrb[0].mxu0
        %558 = vdwg.mxu0
        %v559 = vmax.f32 %v554, 0.0
        %v560 = vpack.c.bf16 %v559, %v559
        %v562 = vsel %vm387, %v560, 0
        %564 = vmatprep.subr.bf16.mxu0 0
        %565 = vmatpush1.bf16.msra.mxu0 %v452
        %566 = vmatprep.subr.bf16.mxu0 0
        %567 = vmatpush1.bf16.msra.mxu0 %v453
        %568 = vmatprep.subr.bf16.mxu0 0
        %569 = vmatpush1.bf16.msra.mxu0 0
        %570 = vmatprep.subr.bf16.mxu0 0
        %571 = vmatpush1.bf16.msra.mxu0 0
        %572 = vmatprep.subr.bf16.mxu0 0
        %573 = vmatpush1.bf16.msra.mxu0 0
        %574 = vmatprep.subr.bf16.mxu0 0
        %575 = vmatpush1.bf16.msra.mxu0 0
        %576 = vmatprep.subr.bf16.mxu0 0
        %577 = vmatpush1.bf16.msra.mxu0 0
        %578 = vmatprep.subr.bf16.mxu0 0
        %579 = vmatpush1.bf16.msra.mxu0 0
        %580 = vmatprep.subr.bf16.mxu0 0
        %581 = vmatpush1.bf16.msra.mxu0 0
        %582 = vmatprep.subr.bf16.mxu0 0
        %583 = vmatpush1.bf16.msra.mxu0 0
        %584 = vmatprep.subr.bf16.mxu0 0
        %585 = vmatpush1.bf16.msra.mxu0 0
        %586 = vmatprep.subr.bf16.mxu0 0
        %587 = vmatpush1.bf16.msra.mxu0 0
        %588 = vmatprep.subr.bf16.mxu0 0
        %589 = vmatpush1.bf16.msra.mxu0 0
        %590 = vmatprep.subr.bf16.mxu0 0
        %591 = vmatpush1.bf16.msra.mxu0 0
        %592 = vmatprep.subr.bf16.mxu0 0
        %593 = vmatpush1.bf16.msra.mxu0 0
        %594 = vmatprep.subr.bf16.mxu0 0
        %595 = vmatpush1.bf16.msra.mxu0 0
        %596 = vmatprep.mubr.bf16.mxu0 0
        %597 = vmatmul.mubr.bf16.gmra.mrb[0].mxu0 %v562
        %v598 = vpop.f32.mrb[0].mxu0
        %v599 = vadd.f32 %v442, %v598
        %v600 = vpop.f32.mrb[0].mxu0
        %v601 = vpop.f32.mrb[0].mxu0
        %v602 = vpop.f32.mrb[0].mxu0
        %603 = vdwg.mxu0
        %v604 = vmax.f32 %v599, 0.0
        %v605 = vmul.f32 %v604, %v505
        %v606 = vsel %vm387, %v605, 0.0
        %607 = vadd.xlane.f32.xlu0 %v606
        %v608 = vpop.xlane.xlu0 %607
        %v609 = vadd.f32 %v608, %v512
        %v610 = vsub.f32 0.0, %v513
        %v611 = vmax.f32 %v610, 0.0
        %v612 = vand.u32 2147483647, %v610
        %v613 = vsub.f32 0.0, %v612
        %v614 = vmul.f32 %v613, 1.442695
        %v615 = vpow.pop %v614
        %v616 = vadd.f32 %v615, 1.0
        %v617 = vlog2.pop %v616
        %v618 = vmul.f32 %v617, 0.6931472
        %v619 = vadd.f32 %v611, %v618
        %v620 = vmin.f32 %v619, 100.0
        %v621 = vmax.f32 %v609, 0.0
        %v622 = vand.u32 2147483647, %v609
        %v623 = vsub.f32 0.0, %v622
        %v624 = vmul.f32 %v623, 1.442695
        %v625 = vpow.pop %v624
        %v626 = vadd.f32 %v625, 1.0
        %v627 = vlog2.pop %v626
        %v628 = vmul.f32 %v627, 0.6931472
        %v629 = vadd.f32 %v621, %v628
        %v630 = vmin.f32 %v629, 100.0
        %vm631 = vcmp.ge.f32.partialorder %v513, 0.0
        %v632 = vsel %vm631, 1, 0
        %v633 = vcvt.s32.f32 %v632
        %vm634 = vcmp.lt.f32.partialorder %v609, 0.0
        %v635 = vsel %vm634, 1, 0
        %v636 = vcvt.s32.f32 %v635
        %vm637 = vcmask 7168
        %v638 = vsel %vm637, %v620, 0.0
        %639 = vadd.xlane.f32.xlu0 %v638
        %v640 = vpop.xlane.xlu0 %639
        %v641 = vrot.slane %v640, 4
        %v642 = vadd.f32 %v640, %v641
        %v643 = vrot.slane %v642, 2
        %v644 = vadd.f32 %v642, %v643
        %v645 = vrot.slane %v644, 1
        %v646 = vadd.f32 %v644, %v645
        %s647 = vtos %v646
        %v648 = vsel %vm637, %v630, 0.0
        %649 = vadd.xlane.f32.xlu0 %v648
        %v650 = vpop.xlane.xlu0 %649
        %v651 = vrot.slane %v650, 4
        %v652 = vadd.f32 %v650, %v651
        %v653 = vrot.slane %v652, 2
        %v654 = vadd.f32 %v652, %v653
        %v655 = vrot.slane %v654, 1
        %v656 = vadd.f32 %v654, %v655
        %s657 = vtos %v656
        %v658 = vsel %vm637, %v633, 0.0
        %659 = vadd.xlane.f32.xlu0 %v658
        %v660 = vpop.xlane.xlu0 %659
        %v661 = vrot.slane %v660, 4
        %v662 = vadd.f32 %v660, %v661
        %v663 = vrot.slane %v662, 2
        %v664 = vadd.f32 %v662, %v663
        %v665 = vrot.slane %v664, 1
        %v666 = vadd.f32 %v664, %v665
        %s667 = vtos %v666
        %v668 = vsel %vm637, %v636, 0.0
        %669 = vadd.xlane.f32.xlu0 %v668
        %v670 = vpop.xlane.xlu0 %669
        %v671 = vrot.slane %v670, 4
        %v672 = vadd.f32 %v670, %v671
        %v673 = vrot.slane %v672, 2
        %v674 = vadd.f32 %v672, %v673
        %v675 = vrot.slane %v674, 1
        %v676 = vadd.f32 %v674, %v675
        %s677 = vtos %v676
        %v678 = vlaneseq
        %v679 = vand.u32 %v678, 127
        %vm680 = vcmp.eq.s32.totalorder %v679, 0
        %vm681 = vcmp.eq.s32.totalorder %v679, 1
        %vm682 = vcmp.eq.s32.totalorder %v679, 2
        %vm683 = vcmp.eq.s32.totalorder %v679, 3
        %v684 = vstv %s677
        %v685 = vsel %vm683, %v684, 0.0
        %v686 = vstv %s667
        %v687 = vsel %vm682, %v686, %v685
        %v688 = vstv %s657
        %v689 = vsel %vm681, %v688, %v687
        %v690 = vstv %s647
        %v691 = vsel %vm680, %v690, %v689
        %p692 = scmp.eq.s32.totalorder %s27, 0
        // Predicated region
        $region65: #{tpu_custom_call.1} parent=51 // pred_check
          %p693 = pneg %p692
        $region66: #{tpu_custom_call.1} parent=51 // pred_check_branch
          %695 = sbr.rel (%p693) target = $region68
        $region67: #{tpu_custom_call.1} parent=51 // pred_region
          %696 = vst [vmem:[#allocation9] sm:$0xff] 0.0
        $region68: #{tpu_custom_call.1} parent=51 // pred_fallthru
          _
        %v697 = vld [vmem:[#allocation9] sm:$0xff]
        %v698 = vadd.f32 %v697, %v691
        %699 = vst [vmem:[#allocation9] sm:$0xff] %v698
        // Predicated region
        $region69: #{tpu_custom_call.1} parent=51 // pred_check
          %p700 = pneg %p218
        $region70: #{tpu_custom_call.1} parent=51 // pred_check_branch
          %702 = sbr.rel (%p700) target = $region72
        $region71: #{tpu_custom_call.1} parent=51 // pred_region
          %s704 = ssub.s32 128, 128
          %705 = vsyncadd [#allocation5], %s704
          %s707 = sshll.u32 [#allocation9], 4
          %s708 = int_to_ptr.vmem [resolvable:$true] %s707
          %710 = dma.vmem_to_hbm [thread:$0]  %s708, 128, %s8, [#allocation5]
        $region72: #{tpu_custom_call.1} parent=51 // pred_fallthru
          _
        // Predicated region
        $region73: #{tpu_custom_call.1} parent=51 // pred_check
          %p711 = pneg %p218
        $region74: #{tpu_custom_call.1} parent=51 // pred_check_branch
          %713 = sbr.rel (%p711) target = $region76
        $region75: #{tpu_custom_call.1} parent=51 // pred_region
          %714 = dma.done [#allocation5], 128
        $region76: #{tpu_custom_call.1} parent=51 // pred_fallthru
          _
      $region52: #{tpu_custom_call.1} parent=5 // pred_fallthru
        _
      %p715 = scmp.le.s32.totalorder 2, %s22
      // Predicated region
      $region77: #{tpu_custom_call.1} parent=5 // pred_check
        %p716 = pneg %p715
      $region78: #{tpu_custom_call.1} parent=5 // pred_check_branch
        %718 = sbr.rel (%p716) target = $region80
      $region79: #{tpu_custom_call.1} parent=5 // pred_region
        %s719 = ssub.s32 %s22, 2
      $region80: #{tpu_custom_call.1} parent=5 // pred_fallthru
        _
    $region6: #{tpu_custom_call.1} parent=1 // loop_footer
      %s26 = sadd.s32 1, %s22
    $region7: #{tpu_custom_call.1} parent=1 // loop_footer_branch
      %21 = sbr.rel target = $region3
    $region8: #{tpu_custom_call.1} parent=1 // loop_exit
      _
    %720 = vsyncpa [#allocation4], 1
    %s721 = scalar_lea.sflag [#allocation4], 1
    %722 = vsyncpa %s721, 1
    %723 = vsyncpa [#allocation7], 1
    %s724 = scalar_lea.sflag [#allocation7], 1
    %725 = vsyncpa %s724, 1
    %726 = vsyncpa [#allocation5], 1
    %s727 = scalar_lea.sflag [#allocation5], 1
    %728 = vsyncpa %s727, 1

// kernel: tpu_custom_call.1
$region0: #{tpu_custom_call.1}
  #allocation0 [shape = 'u32[]', space=smem, size = 0x4, offset = 0x4, fixed_abs, tag = 'smem constant byte address 0x4 - core index']
  #allocation1 [shape = 'u32[144,128]{1,0:T(1,128)}', space=vmem, size = 0x12000, scoped, tag = 'internal scratch']
  #allocation2 [shape = 'f32[1]{0:T(128)S(6)}', space=smem, size = 0x200, scoped, tag = 'scoped memory for tpu_custom_call.1']
  %s0 = inlined_call_operand.hbm [shape: f32[16,32], index: 0, kind: input, shape index: {}]
  %s1 = inlined_call_operand.hbm [shape: f32[16,32], index: 1, kind: input, shape index: {}]
  %s2 = inlined_call_operand.hbm [shape: bf16[32,32], index: 2, kind: input, shape index: {}]
  %s3 = inlined_call_operand.vmem [shape: f32[1,32], index: 3, kind: input, shape index: {}]
  %s4 = inlined_call_operand.vmem [shape: bf16[32,32], index: 4, kind: input, shape index: {}]
  %s5 = inlined_call_operand.vmem [shape: f32[1,32], index: 5, kind: input, shape index: {}]
  %s6 = inlined_call_operand.vmem [shape: f32[1,32], index: 6, kind: input, shape index: {}]
  %s7 = inlined_call_operand.<no memory space> [shape: f32[1], index: 7, kind: input, shape index: {}]
  %s8 = inlined_call_operand.hbm [shape: f32[8,128], index: 8, kind: output, shape index: {}]
  %s9 = sld [smem:[#allocation0]]
  $region81: #{tpu_custom_call.1} parent=0
    _
  %s11 = ssub.s32 1, %s9
  %s12 = scalar_select 0, %s11, %s9
  %13 = sst [smem:[#allocation2]] %s7
  $region1: #{tpu_custom_call.1} parent=0
    #allocation3 [shape = 'u8[8192]{0}', space=vmem, size = 0x2000, scoped, tag = 'input window, operand 0']
    #allocation4 [shape = 's32[2]{0}', space=sflag, size = 0x8, scoped, tag = 'scoped memory for tpu_custom_call.1']
    #allocation5 [shape = 's32[2]{0}', space=sflag, size = 0x8, scoped, tag = 'scoped memory for tpu_custom_call.1']
    #allocation6 [shape = 'u8[8192]{0}', space=vmem, size = 0x2000, scoped, tag = 'input window, operand 1']
    #allocation7 [shape = 's32[2]{0}', space=sflag, size = 0x8, scoped, tag = 'scoped memory for tpu_custom_call.1']
    #allocation8 [shape = 'u8[8192]{0}', space=vmem, size = 0x2000, scoped, tag = 'input window, operand 2, single buffered']
    #allocation9 [shape = 'u8[4096]{0}', space=vmem, size = 0x1000, scoped, tag = 'output window, operand 0, single buffered']
    %14 = vsyncpa [#allocation4], 0
    %s15 = scalar_lea.sflag [#allocation4], 1
    %16 = vsyncpa %s15, 0
    %17 = vsyncpa [#allocation7], 0
    %s18 = scalar_lea.sflag [#allocation7], 1
    %19 = vsyncpa %s18, 0
    %20 = vsyncpa [#allocation5], 0
    loop: start=0, step=1, limit=4
    $region2: #{tpu_custom_call.1} parent=1 // loop_pre_header
      _
    $region3: #{tpu_custom_call.1} parent=1 // loop_header
      %s22 = sphi 0, %s26
      %p23 = scmp.ge.s32.totalorder %s22, 4
      %s32 = sphi 0, %s34
      %s35 = sphi 0, %s32
      %s36 = sphi 0, %s35
      %s52 = sphi 0, %s36
      %s58 = sphi 0, %s60
      %s61 = sphi 0, %s58
      %s62 = sphi 0, %s61
      %s78 = sphi 0, %s62
      %s82 = sphi 0, %s82
      %s84 = sphi 0, %s82
      %s85 = sphi 0, %s84
      %s99 = sphi 0, %s85
      %s103 = sphi 0, %s103
      %s105 = sphi 0, %s103
      %s106 = sphi 0, %s105
      %s120 = sphi 0, %s106
      %s124 = sphi 0, %s124
      %s126 = sphi 0, %s124
      %s127 = sphi 0, %s126
      %s141 = sphi 0, %s127
      %s145 = sphi 0, %s145
      %s147 = sphi 0, %s145
      %s148 = sphi 0, %s147
      %s162 = sphi 0, %s148
      %s166 = sphi 0, %s166
      %s168 = sphi 0, %s166
      %s169 = sphi 0, %s168
      %s183 = sphi 0, %s169
      %s187 = sphi 0, %s187
      %s189 = sphi 0, %s187
      %s190 = sphi 0, %s189
      %s204 = sphi 0, %s190
      %s208 = sphi 0, %s208
      %s210 = sphi 0, %s208
      %s211 = sphi 0, %s210
      %s225 = sphi 0, %s211
    $region4: #{tpu_custom_call.1} parent=1 // loop_header_branch
      %25 = sbr.rel (%p23) target = $region8
    $region5: #{tpu_custom_call.1} parent=1 // loop_body
      %s27 = ssub.s32 %s22, 1
      %s28 = ssub.s32 %s22, 2
      %s29 = sadd.s32 %s22, 1
      %s30 = ssub.s32 %s22, %s29
      %p31 = scmp.eq.s32.totalorder %s30, 0
      %s33 = sadd.s32 %s32, 1
      %s34 = scalar_select %p31, %s32, %s33
      %p37 = pneg %p31
      %p38 = scmp.eq.s32.totalorder %s22, 1
      %p39 = por %p37, %p38
      %p40 = scmp.ne.s32.totalorder %s32, %s35
      %p41 = scmp.eq.s32.totalorder %s22, 0
      %p42 = por %p40, %p41
      %p43 = scmp.ne.s32.totalorder %s32, %s35
      %p44 = scmp.eq.s32.totalorder %s27, 1
      %p45 = por %p43, %p44
      %p46 = scmp.ne.s32.totalorder %s35, %s36
      %p47 = scmp.eq.s32.totalorder %s27, 0
      %p48 = por %p46, %p47
      %p49 = scmp.ne.s32.totalorder %s35, %s36
      %p50 = scmp.eq.s32.totalorder %s28, 1
      %p51 = por %p49, %p50
      %p53 = scmp.ne.s32.totalorder %s36, %s52
      %p54 = scmp.eq.s32.totalorder %s28, 0
      %p55 = por %p53, %p54
      %s56 = ssub.s32 %s22, %s29
      %p57 = scmp.eq.s32.totalorder %s56, 0
      %s59 = sadd.s32 %s58, 1
      %s60 = scalar_select %p57, %s58, %s59
      %p63 = pneg %p57
      %p64 = scmp.eq.s32.totalorder %s22, 1
      %p65 = por %p63, %p64
      %p66 = scmp.ne.s32.totalorder %s58, %s61
      %p67 = scmp.eq.s32.totalorder %s22, 0
      %p68 = por %p66, %p67
      %p69 = scmp.ne.s32.totalorder %s58, %s61
      %p70 = scmp.eq.s32.totalorder %s27, 1
      %p71 = por %p69, %p70
      %p72 = scmp.ne.s32.totalorder %s61, %s62
      %p73 = scmp.eq.s32.totalorder %s27, 0
      %p74 = por %p72, %p73
      %p75 = scmp.ne.s32.totalorder %s61, %s62
      %p76 = scmp.eq.s32.totalorder %s28, 1
      %p77 = por %p75, %p76
      %p79 = scmp.ne.s32.totalorder %s62, %s78
      %p80 = scmp.eq.s32.totalorder %s28, 0
      %p81 = por %p79, %p80
      %s83 = sadd.s32 %s82, 1
      %p86 = scmp.eq.s32.totalorder %s22, 1
      %p87 = scmp.ne.s32.totalorder %s82, %s84
      %p88 = scmp.eq.s32.totalorder %s22, 0
      %p89 = por %p87, %p88
      %p90 = scmp.ne.s32.totalorder %s82, %s84
      %p91 = scmp.eq.s32.totalorder %s27, 1
      %p92 = por %p90, %p91
      %p93 = scmp.ne.s32.totalorder %s84, %s85
      %p94 = scmp.eq.s32.totalorder %s27, 0
      %p95 = por %p93, %p94
      %p96 = scmp.ne.s32.totalorder %s84, %s85
      %p97 = scmp.eq.s32.totalorder %s28, 1
      %p98 = por %p96, %p97
      %p100 = scmp.ne.s32.totalorder %s85, %s99
      %p101 = scmp.eq.s32.totalorder %s28, 0
      %p102 = por %p100, %p101
      %s104 = sadd.s32 %s103, 1
      %p107 = scmp.eq.s32.totalorder %s22, 1
      %p108 = scmp.ne.s32.totalorder %s103, %s105
      %p109 = scmp.eq.s32.totalorder %s22, 0
      %p110 = por %p108, %p109
      %p111 = scmp.ne.s32.totalorder %s103, %s105
      %p112 = scmp.eq.s32.totalorder %s27, 1
      %p113 = por %p111, %p112
      %p114 = scmp.ne.s32.totalorder %s105, %s106
      %p115 = scmp.eq.s32.totalorder %s27, 0
      %p116 = por %p114, %p115
      %p117 = scmp.ne.s32.totalorder %s105, %s106
      %p118 = scmp.eq.s32.totalorder %s28, 1
      %p119 = por %p117, %p118
      %p121 = scmp.ne.s32.totalorder %s106, %s120
      %p122 = scmp.eq.s32.totalorder %s28, 0
      %p123 = por %p121, %p122
      %s125 = sadd.s32 %s124, 1
      %p128 = scmp.eq.s32.totalorder %s22, 1
      %p129 = scmp.ne.s32.totalorder %s124, %s126
      %p130 = scmp.eq.s32.totalorder %s22, 0
      %p131 = por %p129, %p130
      %p132 = scmp.ne.s32.totalorder %s124, %s126
      %p133 = scmp.eq.s32.totalorder %s27, 1
      %p134 = por %p132, %p133
      %p135 = scmp.ne.s32.totalorder %s126, %s127
      %p136 = scmp.eq.s32.totalorder %s27, 0
      %p137 = por %p135, %p136
      %p138 = scmp.ne.s32.totalorder %s126, %s127
      %p139 = scmp.eq.s32.totalorder %s28, 1
      %p140 = por %p138, %p139
      %p142 = scmp.ne.s32.totalorder %s127, %s141
      %p143 = scmp.eq.s32.totalorder %s28, 0
      %p144 = por %p142, %p143
      %s146 = sadd.s32 %s145, 1
      %p149 = scmp.eq.s32.totalorder %s22, 1
      %p150 = scmp.ne.s32.totalorder %s145, %s147
      %p151 = scmp.eq.s32.totalorder %s22, 0
      %p152 = por %p150, %p151
      %p153 = scmp.ne.s32.totalorder %s145, %s147
      %p154 = scmp.eq.s32.totalorder %s27, 1
      %p155 = por %p153, %p154
      %p156 = scmp.ne.s32.totalorder %s147, %s148
      %p157 = scmp.eq.s32.totalorder %s27, 0
      %p158 = por %p156, %p157
      %p159 = scmp.ne.s32.totalorder %s147, %s148
      %p160 = scmp.eq.s32.totalorder %s28, 1
      %p161 = por %p159, %p160
      %p163 = scmp.ne.s32.totalorder %s148, %s162
      %p164 = scmp.eq.s32.totalorder %s28, 0
      %p165 = por %p163, %p164
      %s167 = sadd.s32 %s166, 1
      %p170 = scmp.eq.s32.totalorder %s22, 1
      %p171 = scmp.ne.s32.totalorder %s166, %s168
      %p172 = scmp.eq.s32.totalorder %s22, 0
      %p173 = por %p171, %p172
      %p174 = scmp.ne.s32.totalorder %s166, %s168
      %p175 = scmp.eq.s32.totalorder %s27, 1
      %p176 = por %p174, %p175
      %p177 = scmp.ne.s32.totalorder %s168, %s169
      %p178 = scmp.eq.s32.totalorder %s27, 0
      %p179 = por %p177, %p178
      %p180 = scmp.ne.s32.totalorder %s168, %s169
      %p181 = scmp.eq.s32.totalorder %s28, 1
      %p182 = por %p180, %p181
      %p184 = scmp.ne.s32.totalorder %s169, %s183
      %p185 = scmp.eq.s32.totalorder %s28, 0
      %p186 = por %p184, %p185
      %s188 = sadd.s32 %s187, 1
      %p191 = scmp.eq.s32.totalorder %s22, 1
      %p192 = scmp.ne.s32.totalorder %s187, %s189
      %p193 = scmp.eq.s32.totalorder %s22, 0
      %p194 = por %p192, %p193
      %p195 = scmp.ne.s32.totalorder %s187, %s189
      %p196 = scmp.eq.s32.totalorder %s27, 1
      %p197 = por %p195, %p196
      %p198 = scmp.ne.s32.totalorder %s189, %s190
      %p199 = scmp.eq.s32.totalorder %s27, 0
      %p200 = por %p198, %p199
      %p201 = scmp.ne.s32.totalorder %s189, %s190
      %p202 = scmp.eq.s32.totalorder %s28, 1
      %p203 = por %p201, %p202
      %p205 = scmp.ne.s32.totalorder %s190, %s204
      %p206 = scmp.eq.s32.totalorder %s28, 0
      %p207 = por %p205, %p206
      %s209 = sadd.s32 %s208, 1
      %p212 = scmp.eq.s32.totalorder %s22, 1
      %p213 = scmp.ne.s32.totalorder %s208, %s210
      %p214 = scmp.eq.s32.totalorder %s22, 0
      %p215 = por %p213, %p214
      %p216 = scmp.ne.s32.totalorder %s208, %s210
      %p217 = scmp.eq.s32.totalorder %s27, 1
      %p218 = por %p216, %p217
      %p219 = scmp.ne.s32.totalorder %s210, %s211
      %p220 = scmp.eq.s32.totalorder %s27, 0
      %p221 = por %p219, %p220
      %p222 = scmp.ne.s32.totalorder %s210, %s211
      %p223 = scmp.eq.s32.totalorder %s28, 1
      %p224 = por %p222, %p223
      %p226 = scmp.ne.s32.totalorder %s211, %s225
      %p227 = scmp.eq.s32.totalorder %s28, 0
      %p228 = por %p226, %p227
      %p229 = scmp.le.s32.totalorder 1, %s22
      %p230 = scmp.lt.s32.totalorder %s22, 3
      %p231 = pnand %p229, %p230
      %p232 = pneg %p231
      // Predicated region
      $region9: #{tpu_custom_call.1} parent=5 // pred_check
        _
      $region10: #{tpu_custom_call.1} parent=5 // pred_check_branch
        %234 = sbr.rel (%p231) target = $region12
      $region11: #{tpu_custom_call.1} parent=5 // pred_region
        %s235 = ssub.s32 %s22, 1
        // Predicated region
        $region13: #{tpu_custom_call.1} parent=11 // pred_check
          %p236 = pneg %p95
        $region14: #{tpu_custom_call.1} parent=11 // pred_check_branch
          %238 = sbr.rel (%p236) target = $region16
        $region15: #{tpu_custom_call.1} parent=11 // pred_region
          %s240 = ssub.s32 256, 256
          %241 = vsyncadd [#allocation7], %s240
          %s242 = sshll.u32 [#allocation8], 4
          %s243 = int_to_ptr.vmem [resolvable:$true] %s242
          %248 = dma.hbm_to_vmem [thread:$0]  %s2, 256, %s243, [#allocation7], 64, 64, 4
        $region16: #{tpu_custom_call.1} parent=11 // pred_fallthru
          _
        // Predicated region
        $region17: #{tpu_custom_call.1} parent=11 // pred_check
          %p249 = pneg %p116
        $region18: #{tpu_custom_call.1} parent=11 // pred_check_branch
          %251 = sbr.rel (%p249) target = $region20
        $region19: #{tpu_custom_call.1} parent=11 // pred_region
          _
        $region20: #{tpu_custom_call.1} parent=11 // pred_fallthru
          _
        // Predicated region
        $region21: #{tpu_custom_call.1} parent=11 // pred_check
          %p252 = pneg %p137
        $region22: #{tpu_custom_call.1} parent=11 // pred_check_branch
          %254 = sbr.rel (%p252) target = $region24
        $region23: #{tpu_custom_call.1} parent=11 // pred_region
          _
        $region24: #{tpu_custom_call.1} parent=11 // pred_fallthru
          _
        // Predicated region
        $region25: #{tpu_custom_call.1} parent=11 // pred_check
          %p255 = pneg %p158
        $region26: #{tpu_custom_call.1} parent=11 // pred_check_branch
          %257 = sbr.rel (%p255) target = $region28
        $region27: #{tpu_custom_call.1} parent=11 // pred_region
          _
        $region28: #{tpu_custom_call.1} parent=11 // pred_fallthru
          _
        // Predicated region
        $region29: #{tpu_custom_call.1} parent=11 // pred_check
          %p258 = pneg %p179
        $region30: #{tpu_custom_call.1} parent=11 // pred_check_branch
          %260 = sbr.rel (%p258) target = $region32
        $region31: #{tpu_custom_call.1} parent=11 // pred_region
          _
        $region32: #{tpu_custom_call.1} parent=11 // pred_fallthru
          _
        // Predicated region
        $region33: #{tpu_custom_call.1} parent=11 // pred_check
          %p261 = pneg %p200
        $region34: #{tpu_custom_call.1} parent=11 // pred_check_branch
          %263 = sbr.rel (%p261) target = $region36
        $region35: #{tpu_custom_call.1} parent=11 // pred_region
          _
        $region36: #{tpu_custom_call.1} parent=11 // pred_fallthru
          _
      $region12: #{tpu_custom_call.1} parent=5 // pred_fallthru
        _
      %p264 = scmp.lt.s32.totalorder %s22, 2
      // Predicated region
      $region37: #{tpu_custom_call.1} parent=5 // pred_check
        %p265 = pneg %p264
      $region38: #{tpu_custom_call.1} parent=5 // pred_check_branch
        %267 = sbr.rel (%p265) target = $region40
      $region39: #{tpu_custom_call.1} parent=5 // pred_region
        // Predicated region
        $region41: #{tpu_custom_call.1} parent=39 // pred_check
          %p268 = pneg %p42
        $region42: #{tpu_custom_call.1} parent=39 // pred_check_branch
          %270 = sbr.rel (%p268) target = $region44
        $region43: #{tpu_custom_call.1} parent=39 // pred_region
          %s271 = sand.u32 %s32, 1
          %s272 = scalar_lea.sflag [#allocation4], %s271
          %s273 = sand.u32 %s32, 1
          %s274 = smul.addr %s273, 8
          %s275 = scalar_lea.vmem [#allocation3], %s274
          %s277 = ssub.s32 128, 128
          %278 = vsyncadd %s272, %s277
          %s279 = smul.addr %s22, 128
          %s280 = scalar_lea.hbm %s0, %s279
          %s282 = sshll.u32 %s275, 4
          %s283 = int_to_ptr.vmem [resolvable:$true] %s282
          %285 = dma.hbm_to_vmem [thread:$0]  %s280, 128, %s283, %s272
        $region44: #{tpu_custom_call.1} parent=39 // pred_fallthru
          _
        // Predicated region
        $region45: #{tpu_custom_call.1} parent=39 // pred_check
          %p286 = pneg %p68
        $region46: #{tpu_custom_call.1} parent=39 // pred_check_branch
          %288 = sbr.rel (%p286) target = $region48
        $region47: #{tpu_custom_call.1} parent=39 // pred_region
          %s289 = sand.u32 %s22, 1
          %s290 = scalar_lea.sflag [#allocation7], %s289
          %s291 = sand.u32 %s58, 1
          %s292 = smul.addr %s291, 8
          %s293 = scalar_lea.vmem [#allocation6], %s292
          %s295 = ssub.s32 128, 128
          %296 = vsyncadd %s290, %s295
          %s297 = smul.addr %s22, 128
          %s298 = scalar_lea.hbm %s1, %s297
          %s300 = sshll.u32 %s293, 4
          %s301 = int_to_ptr.vmem [resolvable:$true] %s300
          %303 = dma.hbm_to_vmem [thread:$0]  %s298, 128, %s301, %s290
        $region48: #{tpu_custom_call.1} parent=39 // pred_fallthru
          _
      $region40: #{tpu_custom_call.1} parent=5 // pred_fallthru
        _
      %p304 = scmp.le.s32.totalorder 1, %s22
      %p305 = scmp.lt.s32.totalorder %s22, 3
      %p306 = pnand %p304, %p305
      %p307 = pneg %p306
      // Predicated region
      $region49: #{tpu_custom_call.1} parent=5 // pred_check
        _
      $region50: #{tpu_custom_call.1} parent=5 // pred_check_branch
        %309 = sbr.rel (%p306) target = $region52
      $region51: #{tpu_custom_call.1} parent=5 // pred_region
        %s310 = ssub.s32 %s22, 1
        %s311 = sand.u32 %s35, 1
        %s312 = scalar_lea.sflag [#allocation4], %s311
        %s313 = sand.u32 %s35, 1
        %s314 = smul.addr %s313, 8
        %s315 = scalar_lea.vmem [#allocation3], %s314
        // Predicated region
        $region53: #{tpu_custom_call.1} parent=51 // pred_check
          %p316 = pneg %p48
        $region54: #{tpu_custom_call.1} parent=51 // pred_check_branch
          %318 = sbr.rel (%p316) target = $region56
        $region55: #{tpu_custom_call.1} parent=51 // pred_region
          %319 = dma.done %s312, 128
        $region56: #{tpu_custom_call.1} parent=51 // pred_fallthru
          _
        %s320 = sand.u32 %s27, 1
        %s321 = scalar_lea.sflag [#allocation7], %s320
        %s322 = sand.u32 %s61, 1
        %s323 = smul.addr %s322, 8
        %s324 = scalar_lea.vmem [#allocation6], %s323
        // Predicated region
        $region57: #{tpu_custom_call.1} parent=51 // pred_check
          %p325 = pneg %p74
        $region58: #{tpu_custom_call.1} parent=51 // pred_check_branch
          %327 = sbr.rel (%p325) target = $region60
        $region59: #{tpu_custom_call.1} parent=51 // pred_region
          %328 = dma.done %s321, 128
        $region60: #{tpu_custom_call.1} parent=51 // pred_fallthru
          _
        // Predicated region
        $region61: #{tpu_custom_call.1} parent=51 // pred_check
          %p329 = pneg %p95
        $region62: #{tpu_custom_call.1} parent=51 // pred_check_branch
          %331 = sbr.rel (%p329) target = $region64
        $region63: #{tpu_custom_call.1} parent=51 // pred_region
          %332 = dma.done [#allocation7], 256
        $region64: #{tpu_custom_call.1} parent=51 // pred_fallthru
          _
        %s333 = sand.u32 %s35, 1
        %s334 = scalar_lea.sflag [#allocation4], %s333
        %s335 = sand.u32 %s35, 1
        %s336 = smul.addr %s335, 8
        %s337 = scalar_lea.vmem [#allocation3], %s336
        %p338 = pneg %p48
        %p339 = pneg %p45
        %s340 = sand.u32 %s27, 1
        %s341 = scalar_lea.sflag [#allocation7], %s340
        %s342 = sand.u32 %s61, 1
        %s343 = smul.addr %s342, 8
        %s344 = scalar_lea.vmem [#allocation6], %s343
        %p345 = pneg %p74
        %p346 = pneg %p71
        %p347 = pneg %p95
        %p348 = pneg %p92
        %p349 = pneg %p116
        %p350 = pneg %p113
        %p351 = pneg %p137
        %p352 = pneg %p134
        %p353 = pneg %p158
        %p354 = pneg %p155
        %p355 = pneg %p179
        %p356 = pneg %p176
        %p357 = pneg %p200
        %p358 = pneg %p197
        %p359 = pneg %p221
        %p360 = pneg %p218
        %v362 = vld [vmem:[%s315] sm:$0xff]
        %v363 = vpack.c.bf16 %v362, %v362
        %v364 = vld [vmem:[#allocation8] sm:$0xf]
        %v365 = vld [vmem:[#allocation8 + $0x4] sm:$0xf]
        %v366 = vld [vmem:[#allocation8 + $0x8] sm:$0xf]
        %v367 = vld [vmem:[#allocation8 + $0xc] sm:$0xf]
        %v368 = vld [vmem:[%s3] sm:$0x1]
        %v370 = vlaneseq
        %v371 = vshrl.u32 %v370, 7
        %v372 = vsub.s32 0, %v371
        %v373 = vrot.slane %v368, %v372
        %v379 = vunpack.c.l.b16 %v364
        %v380 = vunpack.c.l.b16 %v365
        %v381 = vunpack.c.l.b16 %v366
        %v382 = vunpack.c.l.b16 %v367
        %v383 = vpack.c.b16 %v380, %v379
        %v384 = vpack.c.b16 %v382, %v381
        %vm387 = vcmask 261120
        %v389 = vsel %vm387, %v363, 0
        %391 = vmatprep.subr.bf16.mxu0 0
        %392 = vmatpush1.bf16.msra.mxu0 %v383
        %393 = vmatprep.subr.bf16.mxu0 0
        %394 = vmatpush1.bf16.msra.mxu0 %v384
        %395 = vmatprep.subr.bf16.mxu0 0
        %396 = vmatpush1.bf16.msra.mxu0 0
        %397 = vmatprep.subr.bf16.mxu0 0
        %398 = vmatpush1.bf16.msra.mxu0 0
        %399 = vmatprep.subr.bf16.mxu0 0
        %400 = vmatpush1.bf16.msra.mxu0 0
        %401 = vmatprep.subr.bf16.mxu0 0
        %402 = vmatpush1.bf16.msra.mxu0 0
        %403 = vmatprep.subr.bf16.mxu0 0
        %404 = vmatpush1.bf16.msra.mxu0 0
        %405 = vmatprep.subr.bf16.mxu0 0
        %406 = vmatpush1.bf16.msra.mxu0 0
        %407 = vmatprep.subr.bf16.mxu0 0
        %408 = vmatpush1.bf16.msra.mxu0 0
        %409 = vmatprep.subr.bf16.mxu0 0
        %410 = vmatpush1.bf16.msra.mxu0 0
        %411 = vmatprep.subr.bf16.mxu0 0
        %412 = vmatpush1.bf16.msra.mxu0 0
        %413 = vmatprep.subr.bf16.mxu0 0
        %414 = vmatpush1.bf16.msra.mxu0 0
        %415 = vmatprep.subr.bf16.mxu0 0
        %416 = vmatpush1.bf16.msra.mxu0 0
        %417 = vmatprep.subr.bf16.mxu0 0
        %418 = vmatpush1.bf16.msra.mxu0 0
        %419 = vmatprep.subr.bf16.mxu0 0
        %420 = vmatpush1.bf16.msra.mxu0 0
        %421 = vmatprep.subr.bf16.mxu0 0
        %422 = vmatpush1.bf16.msra.mxu0 0
        %423 = vmatprep.mubr.bf16.mxu0 0
        %424 = vmatmul.mubr.bf16.gmra.mrb[0].mxu0 %v389
        %v425 = vpop.f32.mrb[0].mxu0
        %v426 = vadd.f32 %v373, %v425
        %v427 = vpop.f32.mrb[0].mxu0
        %v428 = vpop.f32.mrb[0].mxu0
        %v429 = vpop.f32.mrb[0].mxu0
        %430 = vdwg.mxu0
        %v431 = vmax.f32 %v426, 0.0
        %v432 = vpack.c.bf16 %v431, %v431
        %v433 = vld [vmem:[%s4] sm:$0xf]
        %v434 = vld [vmem:[%s4 + $0x4] sm:$0xf]
        %v435 = vld [vmem:[%s4 + $0x8] sm:$0xf]
        %v436 = vld [vmem:[%s4 + $0xc] sm:$0xf]
        %v437 = vld [vmem:[%s5] sm:$0x1]
        %v439 = vlaneseq
        %v440 = vshrl.u32 %v439, 7
        %v441 = vsub.s32 0, %v440
        %v442 = vrot.slane %v437, %v441
        %v448 = vunpack.c.l.b16 %v433
        %v449 = vunpack.c.l.b16 %v434
        %v450 = vunpack.c.l.b16 %v435
        %v451 = vunpack.c.l.b16 %v436
        %v452 = vpack.c.b16 %v449, %v448
        %v453 = vpack.c.b16 %v451, %v450
        %v457 = vsel %vm387, %v432, 0
        %459 = vmatprep.subr.bf16.mxu0 0
        %460 = vmatpush1.bf16.msra.mxu0 %v452
        %461 = vmatprep.subr.bf16.mxu0 0
        %462 = vmatpush1.bf16.msra.mxu0 %v453
        %463 = vmatprep.subr.bf16.mxu0 0
        %464 = vmatpush1.bf16.msra.mxu0 0
        %465 = vmatprep.subr.bf16.mxu0 0
        %466 = vmatpush1.bf16.msra.mxu0 0
        %467 = vmatprep.subr.bf16.mxu0 0
        %468 = vmatpush1.bf16.msra.mxu0 0
        %469 = vmatprep.subr.bf16.mxu0 0
        %470 = vmatpush1.bf16.msra.mxu0 0
        %471 = vmatprep.subr.bf16.mxu0 0
        %472 = vmatpush1.bf16.msra.mxu0 0
        %473 = vmatprep.subr.bf16.mxu0 0
        %474 = vmatpush1.bf16.msra.mxu0 0
        %475 = vmatprep.subr.bf16.mxu0 0
        %476 = vmatpush1.bf16.msra.mxu0 0
        %477 = vmatprep.subr.bf16.mxu0 0
        %478 = vmatpush1.bf16.msra.mxu0 0
        %479 = vmatprep.subr.bf16.mxu0 0
        %480 = vmatpush1.bf16.msra.mxu0 0
        %481 = vmatprep.subr.bf16.mxu0 0
        %482 = vmatpush1.bf16.msra.mxu0 0
        %483 = vmatprep.subr.bf16.mxu0 0
        %484 = vmatpush1.bf16.msra.mxu0 0
        %485 = vmatprep.subr.bf16.mxu0 0
        %486 = vmatpush1.bf16.msra.mxu0 0
        %487 = vmatprep.subr.bf16.mxu0 0
        %488 = vmatpush1.bf16.msra.mxu0 0
        %489 = vmatprep.subr.bf16.mxu0 0
        %490 = vmatpush1.bf16.msra.mxu0 0
        %491 = vmatprep.mubr.bf16.mxu0 0
        %492 = vmatmul.mubr.bf16.gmra.mrb[0].mxu0 %v457
        %v493 = vpop.f32.mrb[0].mxu0
        %v494 = vadd.f32 %v442, %v493
        %v495 = vpop.f32.mrb[0].mxu0
        %v496 = vpop.f32.mrb[0].mxu0
        %v497 = vpop.f32.mrb[0].mxu0
        %498 = vdwg.mxu0
        %v499 = vmax.f32 %v494, 0.0
        %v500 = vld [vmem:[%s6] sm:$0x1]
        %v502 = vlaneseq
        %v503 = vshrl.u32 %v502, 7
        %v504 = vsub.s32 0, %v503
        %v505 = vrot.slane %v500, %v504
        %v507 = vmul.f32 %v499, %v505
        %v508 = vsel %vm387, %v507, 0.0
        %509 = vadd.xlane.f32.xlu0 %v508
        %v510 = vpop.xlane.xlu0 %509
        %s511 = sld [smem:[#allocation2]]
        %v512 = vstv %s511
        %v513 = vadd.f32 %v510, %v512
        %v514 = vld [vmem:[%s324] sm:$0xff]
        %v515 = vpack.c.bf16 %v514, %v514
        %v517 = vsel %vm387, %v515, 0
        %519 = vmatprep.subr.bf16.mxu0 0
        %520 = vmatpush1.bf16.msra.mxu0 %v383
        %521 = vmatprep.subr.bf16.mxu0 0
        %522 = vmatpush1.bf16.msra.mxu0 %v384
        %523 = vmatprep.subr.bf16.mxu0 0
        %524 = vmatpush1.bf16.msra.mxu0 0
        %525 = vmatprep.subr.bf16.mxu0 0
        %526 = vmatpush1.bf16.msra.mxu0 0
        %527 = vmatprep.subr.bf16.mxu0 0
        %528 = vmatpush1.bf16.msra.mxu0 0
        %529 = vmatprep.subr.bf16.mxu0 0
        %530 = vmatpush1.bf16.msra.mxu0 0
        %531 = vmatprep.subr.bf16.mxu0 0
        %532 = vmatpush1.bf16.msra.mxu0 0
        %533 = vmatprep.subr.bf16.mxu0 0
        %534 = vmatpush1.bf16.msra.mxu0 0
        %535 = vmatprep.subr.bf16.mxu0 0
        %536 = vmatpush1.bf16.msra.mxu0 0
        %537 = vmatprep.subr.bf16.mxu0 0
        %538 = vmatpush1.bf16.msra.mxu0 0
        %539 = vmatprep.subr.bf16.mxu0 0
        %540 = vmatpush1.bf16.msra.mxu0 0
        %541 = vmatprep.subr.bf16.mxu0 0
        %542 = vmatpush1.bf16.msra.mxu0 0
        %543 = vmatprep.subr.bf16.mxu0 0
        %544 = vmatpush1.bf16.msra.mxu0 0
        %545 = vmatprep.subr.bf16.mxu0 0
        %546 = vmatpush1.bf16.msra.mxu0 0
        %547 = vmatprep.subr.bf16.mxu0 0
        %548 = vmatpush1.bf16.msra.mxu0 0
        %549 = vmatprep.subr.bf16.mxu0 0
        %550 = vmatpush1.bf16.msra.mxu0 0
        %551 = vmatprep.mubr.bf16.mxu0 0
        %552 = vmatmul.mubr.bf16.gmra.mrb[0].mxu0 %v517
        %v553 = vpop.f32.mrb[0].mxu0
        %v554 = vadd.f32 %v373, %v553
        %v555 = vpop.f32.mrb[0].mxu0
        %v556 = vpop.f32.mrb[0].mxu0
        %v557 = vpop.f32.mrb[0].mxu0
        %558 = vdwg.mxu0
        %v559 = vmax.f32 %v554, 0.0
        %v560 = vpack.c.bf16 %v559, %v559
        %v562 = vsel %vm387, %v560, 0
        %564 = vmatprep.subr.bf16.mxu0 0
        %565 = vmatpush1.bf16.msra.mxu0 %v452
        %566 = vmatprep.subr.bf16.mxu0 0
        %567 = vmatpush1.bf16.msra.mxu0 %v453
        %568 = vmatprep.subr.bf16.mxu0 0
        %569 = vmatpush1.bf16.msra.mxu0 0
        %570 = vmatprep.subr.bf16.mxu0 0
        %571 = vmatpush1.bf16.msra.mxu0 0
        %572 = vmatprep.subr.bf16.mxu0 0
        %573 = vmatpush1.bf16.msra.mxu0 0
        %574 = vmatprep.subr.bf16.mxu0 0
        %575 = vmatpush1.bf16.msra.mxu0 0
        %576 = vmatprep.subr.bf16.mxu0 0
        %577 = vmatpush1.bf16.msra.mxu0 0
        %578 = vmatprep.subr.bf16.mxu0 0
        %579 = vmatpush1.bf16.msra.mxu0 0
        %580 = vmatprep.subr.bf16.mxu0 0
        %581 = vmatpush1.bf16.msra.mxu0 0
        %582 = vmatprep.subr.bf16.mxu0 0
        %583 = vmatpush1.bf16.msra.mxu0 0
        %584 = vmatprep.subr.bf16.mxu0 0
        %585 = vmatpush1.bf16.msra.mxu0 0
        %586 = vmatprep.subr.bf16.mxu0 0
        %587 = vmatpush1.bf16.msra.mxu0 0
        %588 = vmatprep.subr.bf16.mxu0 0
        %589 = vmatpush1.bf16.msra.mxu0 0
        %590 = vmatprep.subr.bf16.mxu0 0
        %591 = vmatpush1.bf16.msra.mxu0 0
        %592 = vmatprep.subr.bf16.mxu0 0
        %593 = vmatpush1.bf16.msra.mxu0 0
        %594 = vmatprep.subr.bf16.mxu0 0
        %595 = vmatpush1.bf16.msra.mxu0 0
        %596 = vmatprep.mubr.bf16.mxu0 0
        %597 = vmatmul.mubr.bf16.gmra.mrb[0].mxu0 %v562
        %v598 = vpop.f32.mrb[0].mxu0
        %v599 = vadd.f32 %v442, %v598
        %v600 = vpop.f32.mrb[0].mxu0
        %v601 = vpop.f32.mrb[0].mxu0
        %v602 = vpop.f32.mrb[0].mxu0
        %603 = vdwg.mxu0
        %v604 = vmax.f32 %v599, 0.0
        %v605 = vmul.f32 %v604, %v505
        %v606 = vsel %vm387, %v605, 0.0
        %607 = vadd.xlane.f32.xlu0 %v606
        %v608 = vpop.xlane.xlu0 %607
        %v609 = vadd.f32 %v608, %v512
        %v610 = vsub.f32 0.0, %v513
        %v611 = vmax.f32 %v610, 0.0
        %v612 = vand.u32 2147483647, %v610
        %v613 = vsub.f32 0.0, %v612
        %v614 = vmul.f32 %v613, 1.442695
        %v615 = vpow.pop %v614
        %v616 = vadd.f32 %v615, 1.0
        %v617 = vlog2.pop %v616
        %v618 = vmul.f32 %v617, 0.6931472
        %v619 = vadd.f32 %v611, %v618
        %v620 = vmin.f32 %v619, 100.0
        %v621 = vmax.f32 %v609, 0.0
        %v622 = vand.u32 2147483647, %v609
        %v623 = vsub.f32 0.0, %v622
        %v624 = vmul.f32 %v623, 1.442695
        %v625 = vpow.pop %v624
        %v626 = vadd.f32 %v625, 1.0
        %v627 = vlog2.pop %v626
        %v628 = vmul.f32 %v627, 0.6931472
        %v629 = vadd.f32 %v621, %v628
        %v630 = vmin.f32 %v629, 100.0
        %vm631 = vcmp.ge.f32.partialorder %v513, 0.0
        %v632 = vsel %vm631, 1, 0
        %v633 = vcvt.s32.f32 %v632
        %vm634 = vcmp.lt.f32.partialorder %v609, 0.0
        %v635 = vsel %vm634, 1, 0
        %v636 = vcvt.s32.f32 %v635
        %vm637 = vcmask 7168
        %v638 = vsel %vm637, %v620, 0.0
        %639 = vadd.xlane.f32.xlu0 %v638
        %v640 = vpop.xlane.xlu0 %639
        %v641 = vrot.slane %v640, 4
        %v642 = vadd.f32 %v640, %v641
        %v643 = vrot.slane %v642, 2
        %v644 = vadd.f32 %v642, %v643
        %v645 = vrot.slane %v644, 1
        %v646 = vadd.f32 %v644, %v645
        %s647 = vtos %v646
        %v648 = vsel %vm637, %v630, 0.0
        %649 = vadd.xlane.f32.xlu0 %v648
        %v650 = vpop.xlane.xlu0 %649
        %v651 = vrot.slane %v650, 4
        %v652 = vadd.f32 %v650, %v651
        %v653 = vrot.slane %v652, 2
        %v654 = vadd.f32 %v652, %v653
        %v655 = vrot.slane %v654, 1
        %v656 = vadd.f32 %v654, %v655
        %s657 = vtos %v656
        %v658 = vsel %vm637, %v633, 0.0
        %659 = vadd.xlane.f32.xlu0 %v658
        %v660 = vpop.xlane.xlu0 %659
        %v661 = vrot.slane %v660, 4
        %v662 = vadd.f32 %v660, %v661
        %v663 = vrot.slane %v662, 2
        %v664 = vadd.f32 %v662, %v663
        %v665 = vrot.slane %v664, 1
        %v666 = vadd.f32 %v664, %v665
        %s667 = vtos %v666
        %v668 = vsel %vm637, %v636, 0.0
        %669 = vadd.xlane.f32.xlu0 %v668
        %v670 = vpop.xlane.xlu0 %669
        %v671 = vrot.slane %v670, 4
        %v672 = vadd.f32 %v670, %v671
        %v673 = vrot.slane %v672, 2
        %v674 = vadd.f32 %v672, %v673
        %v675 = vrot.slane %v674, 1
        %v676 = vadd.f32 %v674, %v675
        %s677 = vtos %v676
        %v678 = vlaneseq
        %v679 = vand.u32 %v678, 127
        %vm680 = vcmp.eq.s32.totalorder %v679, 0
        %vm681 = vcmp.eq.s32.totalorder %v679, 1
        %vm682 = vcmp.eq.s32.totalorder %v679, 2
        %vm683 = vcmp.eq.s32.totalorder %v679, 3
        %v684 = vstv %s677
        %v685 = vsel %vm683, %v684, 0.0
        %v686 = vstv %s667
        %v687 = vsel %vm682, %v686, %v685
        %v688 = vstv %s657
        %v689 = vsel %vm681, %v688, %v687
        %v690 = vstv %s647
        %v691 = vsel %vm680, %v690, %v689
        %p692 = scmp.eq.s32.totalorder %s27, 0
        // Predicated region
        $region65: #{tpu_custom_call.1} parent=51 // pred_check
          %p693 = pneg %p692
        $region66: #{tpu_custom_call.1} parent=51 // pred_check_branch
          %695 = sbr.rel (%p693) target = $region68
        $region67: #{tpu_custom_call.1} parent=51 // pred_region
          %696 = vst [vmem:[#allocation9] sm:$0xff] 0.0
        $region68: #{tpu_custom_call.1} parent=51 // pred_fallthru
          _
        %v697 = vld [vmem:[#allocation9] sm:$0xff]
        %v698 = vadd.f32 %v697, %v691
        %699 = vst [vmem:[#allocation9] sm:$0xff] %v698
        // Predicated region
        $region69: #{tpu_custom_call.1} parent=51 // pred_check
          %p700 = pneg %p218
        $region70: #{tpu_custom_call.1} parent=51 // pred_check_branch
          %702 = sbr.rel (%p700) target = $region72
        $region71: #{tpu_custom_call.1} parent=51 // pred_region
          %s704 = ssub.s32 128, 128
          %705 = vsyncadd [#allocation5], %s704
          %s707 = sshll.u32 [#allocation9], 4
          %s708 = int_to_ptr.vmem [resolvable:$true] %s707
          %710 = dma.vmem_to_hbm [thread:$0]  %s708, 128, %s8, [#allocation5]
        $region72: #{tpu_custom_call.1} parent=51 // pred_fallthru
          _
        // Predicated region
        $region73: #{tpu_custom_call.1} parent=51 // pred_check
          %p711 = pneg %p218
        $region74: #{tpu_custom_call.1} parent=51 // pred_check_branch
          %713 = sbr.rel (%p711) target = $region76
        $region75: #{tpu_custom_call.1} parent=51 // pred_region
          %714 = dma.done [#allocation5], 128
        $region76: #{tpu_custom_call.1} parent=51 // pred_fallthru
          _
      $region52: #{tpu_custom_call.1} parent=5 // pred_fallthru
        _
      %p715 = scmp.le.s32.totalorder 2, %s22
      // Predicated region
      $region77: #{tpu_custom_call.1} parent=5 // pred_check
        %p716 = pneg %p715
      $region78: #{tpu_custom_call.1} parent=5 // pred_check_branch
        %718 = sbr.rel (%p716) target = $region80
      $region79: #{tpu_custom_call.1} parent=5 // pred_region
        %s719 = ssub.s32 %s22, 2
      $region80: #{tpu_custom_call.1} parent=5 // pred_fallthru
        _
    $region6: #{tpu_custom_call.1} parent=1 // loop_footer
      %s26 = sadd.s32 1, %s22
    $region7: #{tpu_custom_call.1} parent=1 // loop_footer_branch
      %21 = sbr.rel target = $region3
    $region8: #{tpu_custom_call.1} parent=1 // loop_exit
      _
    %720 = vsyncpa [#allocation4], 1
    %s721 = scalar_lea.sflag [#allocation4], 1
    %722 = vsyncpa %s721, 1
    %723 = vsyncpa [#allocation7], 1
    %s724 = scalar_lea.sflag [#allocation7], 1
    %725 = vsyncpa %s724, 1
    %726 = vsyncpa [#allocation5], 1
    %s727 = scalar_lea.sflag [#allocation5], 1
    %728 = vsyncpa %s727, 1

</llo_original>
